<compile_context>
chip_gen: v5e
topology: v5e:2x2
jax: 0.10.0
libtpu: 0.0.40
codegen_flags: <defaults>
</compile_context>

<pallas_src>
import functools

import jax
import jax.numpy as jnp
from jax.experimental import pallas as pl
from jax.experimental.pallas import tpu as pltpu

EPS = 1e-6
LEAKY_SLOPE = 0.01   # F.leaky_relu default negative_slope
BN_EPS = 1e-5        # nn.BatchNorm1d default eps


# ----------------------------------------------------------------------------
# Kernel 1 (fused): 3x3 conv (9 shifted-window MXU matmuls) + bias + leaky_relu
#                   + GeM pooling + L2N.  One batch element per grid step.
# ----------------------------------------------------------------------------
def _fused_conv_gem_l2n_kernel(p_ref, x_ref, w_ref, b_ref, m_ref, o_ref, acc_ref,
                               *, H, W):
    """x_ref : (C_in, L)        row-padded, flattened spatial input, L = (H+2)*W + 2
       w_ref : (9, C_feat, C_in) conv weights per tap (k = kh*3 + kw)
       b_ref : (C_feat, 1)       conv bias
       m_ref : (2, H*W)          column-validity masks for the kw=0 / kw=2 taps
       o_ref : (C_feat, 1)       GeM-pooled, L2-normalized features
       acc_ref: (C_feat, H*W)    f32 VMEM accumulator (lane-dense matmul output)"""
    HW = H * W
    for k in range(9):                                   # unrolled: 9 MXU matmuls
        kh, kw = divmod(k, 3)
        start = kh * W + kw                              # static lane offset of the window
        win = x_ref[:, start:start + HW]                 # (C_in, HW)
        if kw == 0:                                      # zero lanes that wrapped from the
            win = win * m_ref[0:1, :]                    # previous row (== zero padding)
        elif kw == 2:
            win = win * m_ref[1:2, :]
        contrib = jnp.dot(w_ref[k], win, preferred_element_type=jnp.float32)
        if k == 0:
            acc_ref[...] = contrib                       # first tap writes (no zero-init pass)
        else:
            acc_ref[...] += contrib

    # backbone stand-in epilogue: bias + leaky_relu (f32)
    z = acc_ref[...] + b_ref[...]
    z = jnp.where(z > 0, z, LEAKY_SLOPE * z)

    # GeM: mean(clamp(z, eps)^p)^(1/p) over the spatial (lane) dim
    p = p_ref[0]
    zp = jnp.exp(p * jnp.log(jnp.maximum(z, EPS)))
    pooled = jnp.sum(zp, axis=1, keepdims=True) * (1.0 / HW)      # (C_feat, 1)
    pooled = jnp.exp(jnp.log(pooled) / p)

    # L2N over the channel dim
    nrm = jnp.sqrt(jnp.sum(pooled * pooled, axis=0, keepdims=True))
    o_ref[...] = pooled / (nrm + EPS)


def fused_backbone_gem_l2n(x, conv_w, conv_b, gem_p, *, compute_dtype=jnp.float32):
    """x: [B, C_in, H, W] NCHW -> [B, C_feat]  (conv3x3 SAME + leaky_relu, GeM, L2N)."""
    B, C_in, H, W = x.shape
    C_feat = conv_w.shape[0]
    HW = H * W
    L = (H + 2) * W + 2

    # Glue (~1x input bytes, no 9x im2col): pad rows, flatten spatial, pad the flat axis by
    # one element on each side so every 3x3 tap becomes a contiguous lane slice of length HW.
    xr = jnp.pad(x, ((0, 0), (0, 0), (1, 1), (0, 0))).reshape(B, C_in, (H + 2) * W)
    xf = jnp.pad(xr, ((0, 0), (0, 0), (1, 1))).astype(compute_dtype)        # [B, C_in, L]

    # Per-tap weights: wf[kh*3+kw, o, i] = conv_w[o, i, kh, kw]
    wf = conv_w.transpose(2, 3, 0, 1).reshape(9, C_feat, C_in).astype(compute_dtype)
    bf = conv_b.reshape(C_feat, 1).astype(jnp.float32)

    # Validity masks for the horizontally shifted taps (reproduce zero padding at the
    # left/right image borders, where the flattened window wraps into the neighbouring row).
    col = jnp.arange(HW) % W
    masks = jnp.stack([(col != 0), (col != W - 1)], axis=0).astype(compute_dtype)  # (2, HW)

    kernel = functools.partial(_fused_conv_gem_l2n_kernel, H=H, W=W)
    pooled = pl.pallas_call(
        kernel,
        out_shape=jax.ShapeDtypeStruct((B, C_feat, 1), jnp.float32),
        grid=(B,),
        in_specs=[
            pl.BlockSpec(memory_space=pltpu.MemorySpace.SMEM),         # gem_p (1,) scalar
            pl.BlockSpec((None, C_in, L), lambda b: (b, 0, 0)),        # one batch element
            pl.BlockSpec((9, C_feat, C_in), lambda b: (0, 0, 0)),      # conv weights (resident)
            pl.BlockSpec((C_feat, 1), lambda b: (0, 0)),               # conv bias
            pl.BlockSpec((2, HW), lambda b: (0, 0)),                   # border masks
        ],
        out_specs=pl.BlockSpec((None, C_feat, 1), lambda b: (b, 0, 0)),
        scratch_shapes=[pltpu.VMEM((C_feat, HW), jnp.float32)],
        compiler_params=pltpu.CompilerParams(dimension_semantics=("parallel",)),
    )(gem_p, xf, wf, bf, masks)
    # TODO(synk): for backbone-scale H*W, add a spatial grid axis with a pl.when
    # init/finalize accumulator (or manual DMA row bands) instead of one image per step.
    return pooled[:, :, 0]                                             # [B, C_feat]


# ----------------------------------------------------------------------------
# Kernel 2: linear head = LinearBlock(inch->hdim, BN, leaky_relu); LinearBlock(hdim->nc, BN)
#           Batch-tiled grid, lane-padded output (unmasked stores), sliced outside.
# ----------------------------------------------------------------------------
def _head_kernel(h_ref, w1_ref, b1_ref, s1_ref, t1_ref,
                 w2_ref, b2_ref, s2_ref, t2_ref, o_ref):
    z1 = jnp.dot(h_ref[...], w1_ref[...], preferred_element_type=jnp.float32) + b1_ref[...]
    z1 = z1 * s1_ref[...] + t1_ref[...]                     # BatchNorm1d (eval, folded)
    z1 = jnp.where(z1 > 0, z1, LEAKY_SLOPE * z1)            # leaky_relu
    z2 = jnp.dot(z1, w2_ref[...], preferred_element_type=jnp.float32) + b2_ref[...]
    o_ref[...] = z2 * s2_ref[...] + t2_ref[...]             # BatchNorm1d (eval, folded)


def linear_head(h, params, *, tile_b=512):
    B, C = h.shape
    hdim = params["w1"].shape[1]
    nc = params["w2"].shape[1]
    ncp = ((nc + 127) // 128) * 128                          # lane-dense output width
    w2p = jnp.pad(params["w2"], ((0, 0), (0, ncp - nc)))
    b2p = jnp.pad(params["b2"], ((0, 0), (0, ncp - nc)))
    s2p = jnp.pad(params["s2"], ((0, 0), (0, ncp - nc)))
    t2p = jnp.pad(params["t2"], ((0, 0), (0, ncp - nc)))

    tb = B if B <= tile_b else tile_b
    out = pl.pallas_call(
        _head_kernel,
        out_shape=jax.ShapeDtypeStruct((B, ncp), jnp.float32),
        grid=(pl.cdiv(B, tb),),
        in_specs=[
            pl.BlockSpec((tb, C), lambda i: (i, 0)),
            pl.BlockSpec((C, hdim), lambda i: (0, 0)),
            pl.BlockSpec((1, hdim), lambda i: (0, 0)),
            pl.BlockSpec((1, hdim), lambda i: (0, 0)),
            pl.BlockSpec((1, hdim), lambda i: (0, 0)),
            pl.BlockSpec((hdim, ncp), lambda i: (0, 0)),
            pl.BlockSpec((1, ncp), lambda i: (0, 0)),
            pl.BlockSpec((1, ncp), lambda i: (0, 0)),
            pl.BlockSpec((1, ncp), lambda i: (0, 0)),
        ],
        out_specs=pl.BlockSpec((tb, ncp), lambda i: (i, 0)),
        compiler_params=pltpu.CompilerParams(dimension_semantics=("parallel",)),
    )(h, params["w1"], params["b1"], params["s1"], params["t1"], w2p, b2p, s2p, t2p)
    return out[:, :nc]


# ----------------------------------------------------------------------------
# Full forward
# ----------------------------------------------------------------------------
@jax.jit
def base_cnn_forward(x, params):
    h = fused_backbone_gem_l2n(x, params["conv_w"], params["conv_b"], params["gem_p"])
    return linear_head(h, params)


def init_params(key, *, c_in, c_feat, hdim, num_class):
    ks = jax.random.split(key, 8)

    def fold_bn(gamma, beta, mean, var):
        scale = gamma / jnp.sqrt(var + BN_EPS)
        shift = beta - mean * scale
        return scale.reshape(1, -1), shift.reshape(1, -1)

    conv_w = 0.1 * jax.random.normal(ks[0], (c_feat, c_in, 3, 3), jnp.float32)
    conv_b = 0.1 * jax.random.normal(ks[1], (c_feat,), jnp.float32)

    gem_p = jnp.ones((1,), jnp.float32) * 3.0                          # Parameter(ones(1)*3)

    w1 = 0.1 * jax.random.normal(ks[2], (c_feat, hdim), jnp.float32)   # (in, out)
    b1 = 0.1 * jax.random.normal(ks[3], (1, hdim), jnp.float32)
    g1 = 1.0 + 0.1 * jax.random.normal(ks[4], (hdim,), jnp.float32)
    be1 = 0.1 * jax.random.normal(ks[5], (hdim,), jnp.float32)
    s1, t1 = fold_bn(g1, be1, jnp.zeros((hdim,)), jnp.ones((hdim,)))

    w2 = 0.1 * jax.random.normal(ks[6], (hdim, num_class), jnp.float32)
    b2 = 0.1 * jax.random.normal(ks[7], (1, num_class), jnp.float32)
    g2 = jnp.ones((num_class,), jnp.float32)
    be2 = jnp.zeros((num_class,), jnp.float32)
    s2, t2 = fold_bn(g2, be2, jnp.zeros((num_class,)), jnp.ones((num_class,)))

    return dict(conv_w=conv_w, conv_b=conv_b, gem_p=gem_p,
                w1=w1, b1=b1, s1=s1, t1=t1, w2=w2, b2=b2, s2=s2, t2=t2)


def reference_forward(x, params):
    """Pure-JAX reference mirroring the PyTorch forward (for correctness check)."""
    fmap = jax.lax.conv_general_dilated(
        x, params["conv_w"], (1, 1), "SAME",
        dimension_numbers=("NCHW", "OIHW", "NCHW")) + params["conv_b"][None, :, None, None]
    fmap = jnp.where(fmap > 0, fmap, LEAKY_SLOPE * fmap)
    p = params["gem_p"][0]
    g = jnp.mean(jnp.clip(fmap, EPS, None) ** p, axis=(-1, -2)) ** (1.0 / p)   # [B, C]
    g = g / (jnp.linalg.norm(g, axis=1, keepdims=True) + EPS)                   # L2N
    z1 = g @ params["w1"] + params["b1"]
    z1 = z1 * params["s1"] + params["t1"]
    z1 = jnp.where(z1 > 0, z1, LEAKY_SLOPE * z1)
    z2 = z1 @ params["w2"] + params["b2"]
    return z2 * params["s2"] + params["t2"]


if __name__ == "__main__":
    B, C_IN, H, W = 2, 4, 16, 16
    C_FEAT, HDIM, NUM_CLASS = 32, 32, 1

    key = jax.random.PRNGKey(0)
    kx, kp = jax.random.split(key)
    x = jax.random.normal(kx, (B, C_IN, H, W), jnp.float32)
    params = init_params(kp, c_in=C_IN, c_feat=C_FEAT, hdim=HDIM, num_class=NUM_CLASS)

    out = jax.block_until_ready(base_cnn_forward(x, params))
    assert out.shape == (B, NUM_CLASS), out.shape

    ref = jax.block_until_ready(reference_forward(x, params))
    assert jnp.allclose(out, ref, rtol=1e-4, atol=1e-4), (out, ref)

    print("KERNEL_OK")
</pallas_src>

<mosaic_0001>
module attributes {stable_mosaic.version = 11 : i64} {
  func.func @_head_kernel(%arg0: i32, %arg1: memref<2x32xf32, #tpu.memory_space<vmem>>, %arg2: memref<32x32xf32, #tpu.memory_space<vmem>>, %arg3: memref<1x32xf32, #tpu.memory_space<vmem>>, %arg4: memref<1x32xf32, #tpu.memory_space<vmem>>, %arg5: memref<1x32xf32, #tpu.memory_space<vmem>>, %arg6: memref<32x128xf32, #tpu.memory_space<vmem>>, %arg7: memref<1x128xf32, #tpu.memory_space<vmem>>, %arg8: memref<1x128xf32, #tpu.memory_space<vmem>>, %arg9: memref<1x128xf32, #tpu.memory_space<vmem>>, %arg10: memref<2x128xf32, #tpu.memory_space<vmem>>) attributes {dimension_semantics = [#tpu.dimension_semantics<parallel>], iteration_bounds = array<i64: 1>, scalar_prefetch = 0 : i64, scratch_operands = 0 : i64, tpu.core_type = #tpu.core_type<tc>, window_params = [{transform_indices = @transform_0, window_bounds = array<i64: 2, 32>}, {pipeline_mode = #tpu.pipeline_mode<synchronous>, transform_indices = @transform_1, window_bounds = array<i64: 32, 32>}, {pipeline_mode = #tpu.pipeline_mode<synchronous>, transform_indices = @transform_2, window_bounds = array<i64: 1, 32>}, {pipeline_mode = #tpu.pipeline_mode<synchronous>, transform_indices = @transform_3, window_bounds = array<i64: 1, 32>}, {pipeline_mode = #tpu.pipeline_mode<synchronous>, transform_indices = @transform_4, window_bounds = array<i64: 1, 32>}, {pipeline_mode = #tpu.pipeline_mode<synchronous>, transform_indices = @transform_5, window_bounds = array<i64: 32, 128>}, {pipeline_mode = #tpu.pipeline_mode<synchronous>, transform_indices = @transform_6, window_bounds = array<i64: 1, 128>}, {pipeline_mode = #tpu.pipeline_mode<synchronous>, transform_indices = @transform_7, window_bounds = array<i64: 1, 128>}, {pipeline_mode = #tpu.pipeline_mode<synchronous>, transform_indices = @transform_8, window_bounds = array<i64: 1, 128>}, {transform_indices = @transform_9, window_bounds = array<i64: 2, 128>}]} {
    %c0 = arith.constant 0 : index
    %c0_0 = arith.constant 0 : index
    %0 = vector.load %arg1[%c0, %c0_0] : memref<2x32xf32, #tpu.memory_space<vmem>>, vector<2x32xf32>
    %c0_1 = arith.constant 0 : index
    %c0_2 = arith.constant 0 : index
    %1 = vector.load %arg2[%c0_1, %c0_2] : memref<32x32xf32, #tpu.memory_space<vmem>>, vector<32x32xf32>
    %cst = arith.constant dense<0.000000e+00> : vector<2x32xf32>
    %2 = tpu.matmul %0, %1, %cst {dimension_numbers = #tpu.dot_dimension_numbers<[1], [0], [0], [1], [0, 0, 1, 1], [], []>} : vector<2x32xf32>, vector<32x32xf32>, vector<2x32xf32> -> vector<2x32xf32>
    %c0_3 = arith.constant 0 : index
    %c0_4 = arith.constant 0 : index
    %3 = vector.load %arg3[%c0_3, %c0_4] : memref<1x32xf32, #tpu.memory_space<vmem>>, vector<1x32xf32>
    %4 = vector.broadcast %3 : vector<1x32xf32> to vector<2x32xf32>
    %5 = arith.addf %2, %4 : vector<2x32xf32>
    %c0_5 = arith.constant 0 : index
    %c0_6 = arith.constant 0 : index
    %6 = vector.load %arg4[%c0_5, %c0_6] : memref<1x32xf32, #tpu.memory_space<vmem>>, vector<1x32xf32>
    %7 = vector.broadcast %6 : vector<1x32xf32> to vector<2x32xf32>
    %8 = arith.mulf %5, %7 : vector<2x32xf32>
    %c0_7 = arith.constant 0 : index
    %c0_8 = arith.constant 0 : index
    %9 = vector.load %arg5[%c0_7, %c0_8] : memref<1x32xf32, #tpu.memory_space<vmem>>, vector<1x32xf32>
    %10 = vector.broadcast %9 : vector<1x32xf32> to vector<2x32xf32>
    %11 = arith.addf %8, %10 : vector<2x32xf32>
    %cst_9 = arith.constant 0.000000e+00 : f32
    %12 = vector.broadcast %cst_9 : f32 to vector<2x32xf32>
    %13 = arith.cmpf ogt, %11, %12 : vector<2x32xf32>
    %cst_10 = arith.constant 0.00999999977 : f32
    %14 = vector.broadcast %cst_10 : f32 to vector<2x32xf32>
    %15 = arith.mulf %14, %11 : vector<2x32xf32>
    %16 = arith.select %13, %11, %15 : vector<2x32xi1>, vector<2x32xf32>
    %c0_11 = arith.constant 0 : index
    %c0_12 = arith.constant 0 : index
    %17 = vector.load %arg6[%c0_11, %c0_12] : memref<32x128xf32, #tpu.memory_space<vmem>>, vector<32x128xf32>
    %cst_13 = arith.constant dense<0.000000e+00> : vector<2x128xf32>
    %18 = tpu.matmul %16, %17, %cst_13 {dimension_numbers = #tpu.dot_dimension_numbers<[1], [0], [0], [1], [0, 0, 1, 1], [], []>} : vector<2x32xf32>, vector<32x128xf32>, vector<2x128xf32> -> vector<2x128xf32>
    %c0_14 = arith.constant 0 : index
    %c0_15 = arith.constant 0 : index
    %19 = vector.load %arg7[%c0_14, %c0_15] : memref<1x128xf32, #tpu.memory_space<vmem>>, vector<1x128xf32>
    %20 = vector.broadcast %19 : vector<1x128xf32> to vector<2x128xf32>
    %21 = arith.addf %18, %20 : vector<2x128xf32>
    %c0_16 = arith.constant 0 : index
    %c0_17 = arith.constant 0 : index
    %22 = vector.load %arg8[%c0_16, %c0_17] : memref<1x128xf32, #tpu.memory_space<vmem>>, vector<1x128xf32>
    %23 = vector.broadcast %22 : vector<1x128xf32> to vector<2x128xf32>
    %24 = arith.mulf %21, %23 : vector<2x128xf32>
    %c0_18 = arith.constant 0 : index
    %c0_19 = arith.constant 0 : index
    %25 = vector.load %arg9[%c0_18, %c0_19] : memref<1x128xf32, #tpu.memory_space<vmem>>, vector<1x128xf32>
    %26 = vector.broadcast %25 : vector<1x128xf32> to vector<2x128xf32>
    %27 = arith.addf %24, %26 : vector<2x128xf32>
    %c0_20 = arith.constant 0 : index
    %c0_21 = arith.constant 0 : index
    %28 = vector.load %arg10[%c0_20, %c0_21] : memref<2x128xf32, #tpu.memory_space<vmem>>, vector<2x128xf32>
    tpu.vector_store %arg10[%c0_20, %c0_21], %27 {strides = array<i32>} : memref<2x128xf32, #tpu.memory_space<vmem>>, vector<2x128xf32>,
    return
  }
  func.func @transform_0(%arg0: i32) -> (i32, i32) {
    %c0_i32 = arith.constant 0 : i32
    %c0_i32_0 = arith.constant 0 : i32
    return %arg0, %c0_i32 : i32, i32
  }
  func.func @transform_1(%arg0: i32) -> (i32, i32) {
    %c0_i32 = arith.constant 0 : i32
    %c0_i32_0 = arith.constant 0 : i32
    %c0_i32_1 = arith.constant 0 : i32
    return %c0_i32, %c0_i32_0 : i32, i32
  }
  func.func @transform_2(%arg0: i32) -> (i32, i32) {
    %c0_i32 = arith.constant 0 : i32
    %c0_i32_0 = arith.constant 0 : i32
    %c0_i32_1 = arith.constant 0 : i32
    return %c0_i32, %c0_i32_0 : i32, i32
  }
  func.func @transform_3(%arg0: i32) -> (i32, i32) {
    %c0_i32 = arith.constant 0 : i32
    %c0_i32_0 = arith.constant 0 : i32
    %c0_i32_1 = arith.constant 0 : i32
    return %c0_i32, %c0_i32_0 : i32, i32
  }
  func.func @transform_4(%arg0: i32) -> (i32, i32) {
    %c0_i32 = arith.constant 0 : i32
    %c0_i32_0 = arith.constant 0 : i32
    %c0_i32_1 = arith.constant 0 : i32
    return %c0_i32, %c0_i32_0 : i32, i32
  }
  func.func @transform_5(%arg0: i32) -> (i32, i32) {
    %c0_i32 = arith.constant 0 : i32
    %c0_i32_0 = arith.constant 0 : i32
    %c0_i32_1 = arith.constant 0 : i32
    return %c0_i32, %c0_i32_0 : i32, i32
  }
  func.func @transform_6(%arg0: i32) -> (i32, i32) {
    %c0_i32 = arith.constant 0 : i32
    %c0_i32_0 = arith.constant 0 : i32
    %c0_i32_1 = arith.constant 0 : i32
    return %c0_i32, %c0_i32_0 : i32, i32
  }
  func.func @transform_7(%arg0: i32) -> (i32, i32) {
    %c0_i32 = arith.constant 0 : i32
    %c0_i32_0 = arith.constant 0 : i32
    %c0_i32_1 = arith.constant 0 : i32
    return %c0_i32, %c0_i32_0 : i32, i32
  }
  func.func @transform_8(%arg0: i32) -> (i32, i32) {
    %c0_i32 = arith.constant 0 : i32
    %c0_i32_0 = arith.constant 0 : i32
    %c0_i32_1 = arith.constant 0 : i32
    return %c0_i32, %c0_i32_0 : i32, i32
  }
  func.func @transform_9(%arg0: i32) -> (i32, i32) {
    %c0_i32 = arith.constant 0 : i32
    %c0_i32_0 = arith.constant 0 : i32
    return %arg0, %c0_i32 : i32, i32
  }
}

module attributes {stable_mosaic.version = 11 : i64} {
  func.func @_fused_conv_gem_l2n_kernel(%arg0: i32, %arg1: memref<1xf32, #tpu.memory_space<smem>>, %arg2: memref<1x4x290xf32, #tpu.memory_space<vmem>>, %arg3: memref<9x32x4xf32, #tpu.memory_space<vmem>>, %arg4: memref<32x1xf32, #tpu.memory_space<vmem>>, %arg5: memref<2x256xf32, #tpu.memory_space<vmem>>, %arg6: memref<1x32x1xf32, #tpu.memory_space<vmem>>, %arg7: memref<32x256xf32, #tpu.memory_space<vmem>>) attributes {dimension_semantics = [#tpu.dimension_semantics<parallel>], iteration_bounds = array<i64: 2>, scalar_prefetch = 0 : i64, scratch_operands = 1 : i64, tpu.core_type = #tpu.core_type<tc>, window_params = [{transform_indices = @transform_0, window_bounds = array<i64: 1>}, {transform_indices = @transform_1, window_bounds = array<i64: 1, 4, 290>}, {pipeline_mode = #tpu.pipeline_mode<synchronous>, transform_indices = @transform_2, window_bounds = array<i64: 9, 32, 4>}, {pipeline_mode = #tpu.pipeline_mode<synchronous>, transform_indices = @transform_3, window_bounds = array<i64: 32, 1>}, {pipeline_mode = #tpu.pipeline_mode<synchronous>, transform_indices = @transform_4, window_bounds = array<i64: 2, 256>}, {transform_indices = @transform_5, window_bounds = array<i64: 1, 32, 1>}]} {
    %c0 = arith.constant 0 : index
    %c0_0 = arith.constant 0 : index
    %c0_1 = arith.constant 0 : index
    %0 = vector.load %arg2[%c0, %c0_0, %c0_1] : memref<1x4x290xf32, #tpu.memory_space<vmem>>, vector<1x4x256xf32>
    %1 = vector.shape_cast %0 : vector<1x4x256xf32> to vector<4x256xf32>
    %c0_2 = arith.constant 0 : index
    %c0_3 = arith.constant 0 : index
    %2 = vector.load %arg5[%c0_2, %c0_3] : memref<2x256xf32, #tpu.memory_space<vmem>>, vector<1x256xf32>
    %3 = vector.broadcast %2 : vector<1x256xf32> to vector<4x256xf32>
    %4 = arith.mulf %1, %3 : vector<4x256xf32>
    %c0_4 = arith.constant 0 : index
    %c0_5 = arith.constant 0 : index
    %c0_6 = arith.constant 0 : index
    %5 = vector.load %arg3[%c0_4, %c0_5, %c0_6] : memref<9x32x4xf32, #tpu.memory_space<vmem>>, vector<1x32x4xf32>
    %6 = vector.shape_cast %5 : vector<1x32x4xf32> to vector<32x4xf32>
    %cst = arith.constant dense<0.000000e+00> : vector<32x256xf32>
    %7 = tpu.matmul %6, %4, %cst {dimension_numbers = #tpu.dot_dimension_numbers<[1], [0], [0], [1], [0, 0, 1, 1], [], []>} : vector<32x4xf32>, vector<4x256xf32>, vector<32x256xf32> -> vector<32x256xf32>
    %c0_7 = arith.constant 0 : index
    %c0_8 = arith.constant 0 : index
    %8 = vector.load %arg7[%c0_7, %c0_8] : memref<32x256xf32, #tpu.memory_space<vmem>>, vector<32x256xf32>
    tpu.vector_store %arg7[%c0_7, %c0_8], %7 {strides = array<i32>} : memref<32x256xf32, #tpu.memory_space<vmem>>, vector<32x256xf32>,
    %c0_9 = arith.constant 0 : index
    %c0_10 = arith.constant 0 : index
    %c1 = arith.constant 1 : index
    %9 = vector.load %arg2[%c0_9, %c0_10, %c1] : memref<1x4x290xf32, #tpu.memory_space<vmem>>, vector<1x4x256xf32>
    %10 = vector.shape_cast %9 : vector<1x4x256xf32> to vector<4x256xf32>
    %c1_11 = arith.constant 1 : index
    %c0_12 = arith.constant 0 : index
    %c0_13 = arith.constant 0 : index
    %11 = vector.load %arg3[%c1_11, %c0_12, %c0_13] : memref<9x32x4xf32, #tpu.memory_space<vmem>>, vector<1x32x4xf32>
    %12 = vector.shape_cast %11 : vector<1x32x4xf32> to vector<32x4xf32>
    %cst_14 = arith.constant dense<0.000000e+00> : vector<32x256xf32>
    %13 = tpu.matmul %12, %10, %cst_14 {dimension_numbers = #tpu.dot_dimension_numbers<[1], [0], [0], [1], [0, 0, 1, 1], [], []>} : vector<32x4xf32>, vector<4x256xf32>, vector<32x256xf32> -> vector<32x256xf32>
    %c0_15 = arith.constant 0 : index
    %c0_16 = arith.constant 0 : index
    %14 = vector.load %arg7[%c0_15, %c0_16] : memref<32x256xf32, #tpu.memory_space<vmem>>, vector<32x256xf32>
    %15 = arith.addf %14, %13 : vector<32x256xf32>
    %c0_17 = arith.constant 0 : index
    %c0_18 = arith.constant 0 : index
    %16 = vector.load %arg7[%c0_17, %c0_18] : memref<32x256xf32, #tpu.memory_space<vmem>>, vector<32x256xf32>
    tpu.vector_store %arg7[%c0_17, %c0_18], %15 {strides = array<i32>} : memref<32x256xf32, #tpu.memory_space<vmem>>, vector<32x256xf32>,
    %c0_19 = arith.constant 0 : index
    %c0_20 = arith.constant 0 : index
    %c2 = arith.constant 2 : index
    %17 = vector.load %arg2[%c0_19, %c0_20, %c2] : memref<1x4x290xf32, #tpu.memory_space<vmem>>, vector<1x4x256xf32>
    %18 = vector.shape_cast %17 : vector<1x4x256xf32> to vector<4x256xf32>
    %c1_21 = arith.constant 1 : index
    %c0_22 = arith.constant 0 : index
    %19 = vector.load %arg5[%c1_21, %c0_22] : memref<2x256xf32, #tpu.memory_space<vmem>>, vector<1x256xf32>
    %20 = vector.broadcast %19 : vector<1x256xf32> to vector<4x256xf32>
    %21 = arith.mulf %18, %20 : vector<4x256xf32>
    %c2_23 = arith.constant 2 : index
    %c0_24 = arith.constant 0 : index
    %c0_25 = arith.constant 0 : index
    %22 = vector.load %arg3[%c2_23, %c0_24, %c0_25] : memref<9x32x4xf32, #tpu.memory_space<vmem>>, vector<1x32x4xf32>
    %23 = vector.shape_cast %22 : vector<1x32x4xf32> to vector<32x4xf32>
    %cst_26 = arith.constant dense<0.000000e+00> : vector<32x256xf32>
    %24 = tpu.matmul %23, %21, %cst_26 {dimension_numbers = #tpu.dot_dimension_numbers<[1], [0], [0], [1], [0, 0, 1, 1], [], []>} : vector<32x4xf32>, vector<4x256xf32>, vector<32x256xf32> -> vector<32x256xf32>
    %c0_27 = arith.constant 0 : index
    %c0_28 = arith.constant 0 : index
    %25 = vector.load %arg7[%c0_27, %c0_28] : memref<32x256xf32, #tpu.memory_space<vmem>>, vector<32x256xf32>
    %26 = arith.addf %25, %24 : vector<32x256xf32>
    %c0_29 = arith.constant 0 : index
    %c0_30 = arith.constant 0 : index
    %27 = vector.load %arg7[%c0_29, %c0_30] : memref<32x256xf32, #tpu.memory_space<vmem>>, vector<32x256xf32>
    tpu.vector_store %arg7[%c0_29, %c0_30], %26 {strides = array<i32>} : memref<32x256xf32, #tpu.memory_space<vmem>>, vector<32x256xf32>,
    %c0_31 = arith.constant 0 : index
    %c0_32 = arith.constant 0 : index
    %c16 = arith.constant 16 : index
    %28 = vector.load %arg2[%c0_31, %c0_32, %c16] : memref<1x4x290xf32, #tpu.memory_space<vmem>>, vector<1x4x256xf32>
    %29 = vector.shape_cast %28 : vector<1x4x256xf32> to vector<4x256xf32>
    %c0_33 = arith.constant 0 : index
    %c0_34 = arith.constant 0 : index
    %30 = vector.load %arg5[%c0_33, %c0_34] : memref<2x256xf32, #tpu.memory_space<vmem>>, vector<1x256xf32>
    %31 = vector.broadcast %30 : vector<1x256xf32> to vector<4x256xf32>
    %32 = arith.mulf %29, %31 : vector<4x256xf32>
    %c3 = arith.constant 3 : index
    %c0_35 = arith.constant 0 : index
    %c0_36 = arith.constant 0 : index
    %33 = vector.load %arg3[%c3, %c0_35, %c0_36] : memref<9x32x4xf32, #tpu.memory_space<vmem>>, vector<1x32x4xf32>
    %34 = vector.shape_cast %33 : vector<1x32x4xf32> to vector<32x4xf32>
    %cst_37 = arith.constant dense<0.000000e+00> : vector<32x256xf32>
    %35 = tpu.matmul %34, %32, %cst_37 {dimension_numbers = #tpu.dot_dimension_numbers<[1], [0], [0], [1], [0, 0, 1, 1], [], []>} : vector<32x4xf32>, vector<4x256xf32>, vector<32x256xf32> -> vector<32x256xf32>
    %c0_38 = arith.constant 0 : index
    %c0_39 = arith.constant 0 : index
    %36 = vector.load %arg7[%c0_38, %c0_39] : memref<32x256xf32, #tpu.memory_space<vmem>>, vector<32x256xf32>
    %37 = arith.addf %36, %35 : vector<32x256xf32>
    %c0_40 = arith.constant 0 : index
    %c0_41 = arith.constant 0 : index
    %38 = vector.load %arg7[%c0_40, %c0_41] : memref<32x256xf32, #tpu.memory_space<vmem>>, vector<32x256xf32>
    tpu.vector_store %arg7[%c0_40, %c0_41], %37 {strides = array<i32>} : memref<32x256xf32, #tpu.memory_space<vmem>>, vector<32x256xf32>,
    %c0_42 = arith.constant 0 : index
    %c0_43 = arith.constant 0 : index
    %c17 = arith.constant 17 : index
    %39 = vector.load %arg2[%c0_42, %c0_43, %c17] : memref<1x4x290xf32, #tpu.memory_space<vmem>>, vector<1x4x256xf32>
    %40 = vector.shape_cast %39 : vector<1x4x256xf32> to vector<4x256xf32>
    %c4 = arith.constant 4 : index
    %c0_44 = arith.constant 0 : index
    %c0_45 = arith.constant 0 : index
    %41 = vector.load %arg3[%c4, %c0_44, %c0_45] : memref<9x32x4xf32, #tpu.memory_space<vmem>>, vector<1x32x4xf32>
    %42 = vector.shape_cast %41 : vector<1x32x4xf32> to vector<32x4xf32>
    %cst_46 = arith.constant dense<0.000000e+00> : vector<32x256xf32>
    %43 = tpu.matmul %42, %40, %cst_46 {dimension_numbers = #tpu.dot_dimension_numbers<[1], [0], [0], [1], [0, 0, 1, 1], [], []>} : vector<32x4xf32>, vector<4x256xf32>, vector<32x256xf32> -> vector<32x256xf32>
    %c0_47 = arith.constant 0 : index
    %c0_48 = arith.constant 0 : index
    %44 = vector.load %arg7[%c0_47, %c0_48] : memref<32x256xf32, #tpu.memory_space<vmem>>, vector<32x256xf32>
    %45 = arith.addf %44, %43 : vector<32x256xf32>
    %c0_49 = arith.constant 0 : index
    %c0_50 = arith.constant 0 : index
    %46 = vector.load %arg7[%c0_49, %c0_50] : memref<32x256xf32, #tpu.memory_space<vmem>>, vector<32x256xf32>
    tpu.vector_store %arg7[%c0_49, %c0_50], %45 {strides = array<i32>} : memref<32x256xf32, #tpu.memory_space<vmem>>, vector<32x256xf32>,
    %c0_51 = arith.constant 0 : index
    %c0_52 = arith.constant 0 : index
    %c18 = arith.constant 18 : index
    %47 = vector.load %arg2[%c0_51, %c0_52, %c18] : memref<1x4x290xf32, #tpu.memory_space<vmem>>, vector<1x4x256xf32>
    %48 = vector.shape_cast %47 : vector<1x4x256xf32> to vector<4x256xf32>
    %c1_53 = arith.constant 1 : index
    %c0_54 = arith.constant 0 : index
    %49 = vector.load %arg5[%c1_53, %c0_54] : memref<2x256xf32, #tpu.memory_space<vmem>>, vector<1x256xf32>
    %50 = vector.broadcast %49 : vector<1x256xf32> to vector<4x256xf32>
    %51 = arith.mulf %48, %50 : vector<4x256xf32>
    %c5 = arith.constant 5 : index
    %c0_55 = arith.constant 0 : index
    %c0_56 = arith.constant 0 : index
    %52 = vector.load %arg3[%c5, %c0_55, %c0_56] : memref<9x32x4xf32, #tpu.memory_space<vmem>>, vector<1x32x4xf32>
    %53 = vector.shape_cast %52 : vector<1x32x4xf32> to vector<32x4xf32>
    %cst_57 = arith.constant dense<0.000000e+00> : vector<32x256xf32>
    %54 = tpu.matmul %53, %51, %cst_57 {dimension_numbers = #tpu.dot_dimension_numbers<[1], [0], [0], [1], [0, 0, 1, 1], [], []>} : vector<32x4xf32>, vector<4x256xf32>, vector<32x256xf32> -> vector<32x256xf32>
    %c0_58 = arith.constant 0 : index
    %c0_59 = arith.constant 0 : index
    %55 = vector.load %arg7[%c0_58, %c0_59] : memref<32x256xf32, #tpu.memory_space<vmem>>, vector<32x256xf32>
    %56 = arith.addf %55, %54 : vector<32x256xf32>
    %c0_60 = arith.constant 0 : index
    %c0_61 = arith.constant 0 : index
    %57 = vector.load %arg7[%c0_60, %c0_61] : memref<32x256xf32, #tpu.memory_space<vmem>>, vector<32x256xf32>
    tpu.vector_store %arg7[%c0_60, %c0_61], %56 {strides = array<i32>} : memref<32x256xf32, #tpu.memory_space<vmem>>, vector<32x256xf32>,
    %c0_62 = arith.constant 0 : index
    %c0_63 = arith.constant 0 : index
    %c32 = arith.constant 32 : index
    %58 = vector.load %arg2[%c0_62, %c0_63, %c32] : memref<1x4x290xf32, #tpu.memory_space<vmem>>, vector<1x4x256xf32>
    %59 = vector.shape_cast %58 : vector<1x4x256xf32> to vector<4x256xf32>
    %c0_64 = arith.constant 0 : index
    %c0_65 = arith.constant 0 : index
    %60 = vector.load %arg5[%c0_64, %c0_65] : memref<2x256xf32, #tpu.memory_space<vmem>>, vector<1x256xf32>
    %61 = vector.broadcast %60 : vector<1x256xf32> to vector<4x256xf32>
    %62 = arith.mulf %59, %61 : vector<4x256xf32>
    %c6 = arith.constant 6 : index
    %c0_66 = arith.constant 0 : index
    %c0_67 = arith.constant 0 : index
    %63 = vector.load %arg3[%c6, %c0_66, %c0_67] : memref<9x32x4xf32, #tpu.memory_space<vmem>>, vector<1x32x4xf32>
    %64 = vector.shape_cast %63 : vector<1x32x4xf32> to vector<32x4xf32>
    %cst_68 = arith.constant dense<0.000000e+00> : vector<32x256xf32>
    %65 = tpu.matmul %64, %62, %cst_68 {dimension_numbers = #tpu.dot_dimension_numbers<[1], [0], [0], [1], [0, 0, 1, 1], [], []>} : vector<32x4xf32>, vector<4x256xf32>, vector<32x256xf32> -> vector<32x256xf32>
    %c0_69 = arith.constant 0 : index
    %c0_70 = arith.constant 0 : index
    %66 = vector.load %arg7[%c0_69, %c0_70] : memref<32x256xf32, #tpu.memory_space<vmem>>, vector<32x256xf32>
    %67 = arith.addf %66, %65 : vector<32x256xf32>
    %c0_71 = arith.constant 0 : index
    %c0_72 = arith.constant 0 : index
    %68 = vector.load %arg7[%c0_71, %c0_72] : memref<32x256xf32, #tpu.memory_space<vmem>>, vector<32x256xf32>
    tpu.vector_store %arg7[%c0_71, %c0_72], %67 {strides = array<i32>} : memref<32x256xf32, #tpu.memory_space<vmem>>, vector<32x256xf32>,
    %c0_73 = arith.constant 0 : index
    %c0_74 = arith.constant 0 : index
    %c33 = arith.constant 33 : index
    %69 = vector.load %arg2[%c0_73, %c0_74, %c33] : memref<1x4x290xf32, #tpu.memory_space<vmem>>, vector<1x4x256xf32>
    %70 = vector.shape_cast %69 : vector<1x4x256xf32> to vector<4x256xf32>
    %c7 = arith.constant 7 : index
    %c0_75 = arith.constant 0 : index
    %c0_76 = arith.constant 0 : index
    %71 = vector.load %arg3[%c7, %c0_75, %c0_76] : memref<9x32x4xf32, #tpu.memory_space<vmem>>, vector<1x32x4xf32>
    %72 = vector.shape_cast %71 : vector<1x32x4xf32> to vector<32x4xf32>
    %cst_77 = arith.constant dense<0.000000e+00> : vector<32x256xf32>
    %73 = tpu.matmul %72, %70, %cst_77 {dimension_numbers = #tpu.dot_dimension_numbers<[1], [0], [0], [1], [0, 0, 1, 1], [], []>} : vector<32x4xf32>, vector<4x256xf32>, vector<32x256xf32> -> vector<32x256xf32>
    %c0_78 = arith.constant 0 : index
    %c0_79 = arith.constant 0 : index
    %74 = vector.load %arg7[%c0_78, %c0_79] : memref<32x256xf32, #tpu.memory_space<vmem>>, vector<32x256xf32>
    %75 = arith.addf %74, %73 : vector<32x256xf32>
    %c0_80 = arith.constant 0 : index
    %c0_81 = arith.constant 0 : index
    %76 = vector.load %arg7[%c0_80, %c0_81] : memref<32x256xf32, #tpu.memory_space<vmem>>, vector<32x256xf32>
    tpu.vector_store %arg7[%c0_80, %c0_81], %75 {strides = array<i32>} : memref<32x256xf32, #tpu.memory_space<vmem>>, vector<32x256xf32>,
    %c0_82 = arith.constant 0 : index
    %c0_83 = arith.constant 0 : index
    %c34 = arith.constant 34 : index
    %77 = vector.load %arg2[%c0_82, %c0_83, %c34] : memref<1x4x290xf32, #tpu.memory_space<vmem>>, vector<1x4x256xf32>
    %78 = vector.shape_cast %77 : vector<1x4x256xf32> to vector<4x256xf32>
    %c1_84 = arith.constant 1 : index
    %c0_85 = arith.constant 0 : index
    %79 = vector.load %arg5[%c1_84, %c0_85] : memref<2x256xf32, #tpu.memory_space<vmem>>, vector<1x256xf32>
    %80 = vector.broadcast %79 : vector<1x256xf32> to vector<4x256xf32>
    %81 = arith.mulf %78, %80 : vector<4x256xf32>
    %c8 = arith.constant 8 : index
    %c0_86 = arith.constant 0 : index
    %c0_87 = arith.constant 0 : index
    %82 = vector.load %arg3[%c8, %c0_86, %c0_87] : memref<9x32x4xf32, #tpu.memory_space<vmem>>, vector<1x32x4xf32>
    %83 = vector.shape_cast %82 : vector<1x32x4xf32> to vector<32x4xf32>
    %cst_88 = arith.constant dense<0.000000e+00> : vector<32x256xf32>
    %84 = tpu.matmul %83, %81, %cst_88 {dimension_numbers = #tpu.dot_dimension_numbers<[1], [0], [0], [1], [0, 0, 1, 1], [], []>} : vector<32x4xf32>, vector<4x256xf32>, vector<32x256xf32> -> vector<32x256xf32>
    %c0_89 = arith.constant 0 : index
    %c0_90 = arith.constant 0 : index
    %85 = vector.load %arg7[%c0_89, %c0_90] : memref<32x256xf32, #tpu.memory_space<vmem>>, vector<32x256xf32>
    %86 = arith.addf %85, %84 : vector<32x256xf32>
    %c0_91 = arith.constant 0 : index
    %c0_92 = arith.constant 0 : index
    %87 = vector.load %arg7[%c0_91, %c0_92] : memref<32x256xf32, #tpu.memory_space<vmem>>, vector<32x256xf32>
    tpu.vector_store %arg7[%c0_91, %c0_92], %86 {strides = array<i32>} : memref<32x256xf32, #tpu.memory_space<vmem>>, vector<32x256xf32>,
    %c0_93 = arith.constant 0 : index
    %c0_94 = arith.constant 0 : index
    %88 = vector.load %arg7[%c0_93, %c0_94] : memref<32x256xf32, #tpu.memory_space<vmem>>, vector<32x256xf32>
    %c0_95 = arith.constant 0 : index
    %c0_96 = arith.constant 0 : index
    %89 = vector.load %arg4[%c0_95, %c0_96] : memref<32x1xf32, #tpu.memory_space<vmem>>, vector<32x1xf32>
    %90 = vector.broadcast %89 : vector<32x1xf32> to vector<32x256xf32>
    %91 = arith.addf %88, %90 : vector<32x256xf32>
    %cst_97 = arith.constant 0.000000e+00 : f32
    %92 = vector.broadcast %cst_97 : f32 to vector<32x256xf32>
    %93 = arith.cmpf ogt, %91, %92 : vector<32x256xf32>
    %cst_98 = arith.constant 0.00999999977 : f32
    %94 = vector.broadcast %cst_98 : f32 to vector<32x256xf32>
    %95 = arith.mulf %94, %91 : vector<32x256xf32>
    %96 = arith.select %93, %91, %95 : vector<32x256xi1>, vector<32x256xf32>
    %c0_99 = arith.constant 0 : index
    %97 = memref.load %arg1[%c0_99] : memref<1xf32, #tpu.memory_space<smem>>
    %cst_100 = arith.constant 9.99999997E-7 : f32
    %98 = vector.broadcast %cst_100 : f32 to vector<32x256xf32>
    %99 = arith.maximumf %96, %98 : vector<32x256xf32>
    %100 = math.log %99 : vector<32x256xf32>
    %101 = vector.broadcast %97 : f32 to vector<32x256xf32>
    %102 = arith.mulf %101, %100 : vector<32x256xf32>
    %103 = math.exp %102 : vector<32x256xf32>
    %cst_101 = arith.constant dense<0.000000e+00> : vector<32xf32>
    %104 = vector.multi_reduction <add>, %103, %cst_101 [1] : vector<32x256xf32> to vector<32xf32>
    %105 = vector.shape_cast %104 : vector<32xf32> to vector<32x1xf32>
    %cst_102 = arith.constant 3.906250e-03 : f32
    %106 = vector.broadcast %cst_102 : f32 to vector<32x1xf32>
    %107 = arith.mulf %105, %106 : vector<32x1xf32>
    %108 = math.log %107 : vector<32x1xf32>
    %109 = vector.broadcast %97 : f32 to vector<32x1xf32>
    %110 = arith.divf %108, %109 : vector<32x1xf32>
    %111 = math.exp %110 : vector<32x1xf32>
    %112 = arith.mulf %111, %111 : vector<32x1xf32>
    %cst_103 = arith.constant dense<0.000000e+00> : vector<1xf32>
    %113 = vector.multi_reduction <add>, %112, %cst_103 [0] : vector<32x1xf32> to vector<1xf32>
    %114 = vector.shape_cast %113 : vector<1xf32> to vector<1x1xf32>
    %115 = math.sqrt %114 : vector<1x1xf32>
    %cst_104 = arith.constant 9.99999997E-7 : f32
    %116 = vector.broadcast %cst_104 : f32 to vector<1x1xf32>
    %117 = arith.addf %115, %116 : vector<1x1xf32>
    %118 = vector.broadcast %117 : vector<1x1xf32> to vector<32x1xf32>
    %119 = arith.divf %111, %118 : vector<32x1xf32>
    %c0_105 = arith.constant 0 : index
    %c0_106 = arith.constant 0 : index
    %c0_107 = arith.constant 0 : index
    %120 = vector.load %arg6[%c0_105, %c0_106, %c0_107] : memref<1x32x1xf32, #tpu.memory_space<vmem>>, vector<1x32x1xf32>
    %121 = vector.shape_cast %120 : vector<1x32x1xf32> to vector<32x1xf32>
    %122 = vector.shape_cast %119 : vector<32x1xf32> to vector<1x32x1xf32>
    tpu.vector_store %arg6[%c0_105, %c0_106, %c0_107], %122 {strides = array<i32>} : memref<1x32x1xf32, #tpu.memory_space<vmem>>, vector<1x32x1xf32>,
    return
  }
  func.func @transform_0(%arg0: i32) -> i32 {
    %c0_i32 = arith.constant 0 : i32
    %c0_i32_0 = arith.constant 0 : i32
    return %c0_i32 : i32
  }
  func.func @transform_1(%arg0: i32) -> (i32, i32, i32) {
    %c0_i32 = arith.constant 0 : i32
    %c0_i32_0 = arith.constant 0 : i32
    %c0_i32_1 = arith.constant 0 : i32
    return %arg0, %c0_i32, %c0_i32_0 : i32, i32, i32
  }
  func.func @transform_2(%arg0: i32) -> (i32, i32, i32) {
    %c0_i32 = arith.constant 0 : i32
    %c0_i32_0 = arith.constant 0 : i32
    %c0_i32_1 = arith.constant 0 : i32
    %c0_i32_2 = arith.constant 0 : i32
    return %c0_i32, %c0_i32_0, %c0_i32_1 : i32, i32, i32
  }
  func.func @transform_3(%arg0: i32) -> (i32, i32) {
    %c0_i32 = arith.constant 0 : i32
    %c0_i32_0 = arith.constant 0 : i32
    %c0_i32_1 = arith.constant 0 : i32
    return %c0_i32, %c0_i32_0 : i32, i32
  }
  func.func @transform_4(%arg0: i32) -> (i32, i32) {
    %c0_i32 = arith.constant 0 : i32
    %c0_i32_0 = arith.constant 0 : i32
    %c0_i32_1 = arith.constant 0 : i32
    return %c0_i32, %c0_i32_0 : i32, i32
  }
  func.func @transform_5(%arg0: i32) -> (i32, i32, i32) {
    %c0_i32 = arith.constant 0 : i32
    %c0_i32_0 = arith.constant 0 : i32
    %c0_i32_1 = arith.constant 0 : i32
    return %arg0, %c0_i32, %c0_i32_0 : i32, i32, i32
  }
}

</mosaic_0001>

<llo_original>
// kernel: base_cnn_forward.3
$region0: #{base_cnn_forward.3}
  #allocation0 [shape = 'u32[]', space=smem, size = 0x4, offset = 0x4, fixed_abs, tag = 'smem constant byte address 0x4 - core index']
  #allocation1 [shape = 'u32[72,128]{1,0:T(1,128)}', space=vmem, size = 0x9000, scoped, tag = 'internal scratch']
  %s0 = inlined_call_operand.vmem [shape: f32[2,32], index: 0, kind: input, shape index: {}]
  %s1 = inlined_call_operand.vmem [shape: f32[32,32], index: 1, kind: input, shape index: {}]
  %s2 = inlined_call_operand.vmem [shape: f32[1,32], index: 2, kind: input, shape index: {}]
  %s3 = inlined_call_operand.vmem [shape: f32[1,32], index: 3, kind: input, shape index: {}]
  %s4 = inlined_call_operand.vmem [shape: f32[1,32], index: 4, kind: input, shape index: {}]
  %s5 = inlined_call_operand.vmem [shape: f32[32,128], index: 5, kind: input, shape index: {}]
  %s6 = inlined_call_operand.vmem [shape: f32[1,128], index: 6, kind: input, shape index: {}]
  %s7 = inlined_call_operand.vmem [shape: f32[1,128], index: 7, kind: input, shape index: {}]
  %s8 = inlined_call_operand.vmem [shape: f32[1,128], index: 8, kind: input, shape index: {}]
  %s9 = inlined_call_operand.vmem [shape: f32[2,128], index: 9, kind: output, shape index: {}]
  %s10 = sld [smem:[#allocation0]]
  $region46: #{base_cnn_forward.3} parent=0
    _
  %s12 = ssub.s32 1, %s10
  %s13 = scalar_select 0, %s12, %s10
  // Predicated region
  $region2: #{base_cnn_forward.3} parent=0 // pred_check
    _
  $region3: #{base_cnn_forward.3} parent=0 // pred_check_branch
    %15 = sbr.rel (0) target = $region5
  $region4: #{base_cnn_forward.3} parent=0 // pred_region
    _
  $region5: #{base_cnn_forward.3} parent=0 // pred_fallthru
    _
  // Predicated region
  $region6: #{base_cnn_forward.3} parent=0 // pred_check
    _
  $region7: #{base_cnn_forward.3} parent=0 // pred_check_branch
    %17 = sbr.rel (0) target = $region9
  $region8: #{base_cnn_forward.3} parent=0 // pred_region
    _
  $region9: #{base_cnn_forward.3} parent=0 // pred_fallthru
    _
  // Predicated region
  $region10: #{base_cnn_forward.3} parent=0 // pred_check
    _
  $region11: #{base_cnn_forward.3} parent=0 // pred_check_branch
    %19 = sbr.rel (0) target = $region13
  $region12: #{base_cnn_forward.3} parent=0 // pred_region
    _
  $region13: #{base_cnn_forward.3} parent=0 // pred_fallthru
    _
  // Predicated region
  $region14: #{base_cnn_forward.3} parent=0 // pred_check
    _
  $region15: #{base_cnn_forward.3} parent=0 // pred_check_branch
    %21 = sbr.rel (0) target = $region17
  $region16: #{base_cnn_forward.3} parent=0 // pred_region
    _
  $region17: #{base_cnn_forward.3} parent=0 // pred_fallthru
    _
  // Predicated region
  $region18: #{base_cnn_forward.3} parent=0 // pred_check
    _
  $region19: #{base_cnn_forward.3} parent=0 // pred_check_branch
    %23 = sbr.rel (0) target = $region21
  $region20: #{base_cnn_forward.3} parent=0 // pred_region
    _
  $region21: #{base_cnn_forward.3} parent=0 // pred_fallthru
    _
  // Predicated region
  $region22: #{base_cnn_forward.3} parent=0 // pred_check
    _
  $region23: #{base_cnn_forward.3} parent=0 // pred_check_branch
    %25 = sbr.rel (0) target = $region25
  $region24: #{base_cnn_forward.3} parent=0 // pred_region
    _
  $region25: #{base_cnn_forward.3} parent=0 // pred_fallthru
    _
  // Predicated region
  $region26: #{base_cnn_forward.3} parent=0 // pred_check
    _
  $region27: #{base_cnn_forward.3} parent=0 // pred_check_branch
    %27 = sbr.rel (0) target = $region29
  $region28: #{base_cnn_forward.3} parent=0 // pred_region
    _
  $region29: #{base_cnn_forward.3} parent=0 // pred_fallthru
    _
  // Predicated region
  $region30: #{base_cnn_forward.3} parent=0 // pred_check
    _
  $region31: #{base_cnn_forward.3} parent=0 // pred_check_branch
    %29 = sbr.rel (0) target = $region33
  $region32: #{base_cnn_forward.3} parent=0 // pred_region
    _
  $region33: #{base_cnn_forward.3} parent=0 // pred_fallthru
    _
  // Predicated region
  $region34: #{base_cnn_forward.3} parent=0 // pred_check
    _
  $region35: #{base_cnn_forward.3} parent=0 // pred_check_branch
    %31 = sbr.rel (0) target = $region37
  $region36: #{base_cnn_forward.3} parent=0 // pred_region
    _
  $region37: #{base_cnn_forward.3} parent=0 // pred_fallthru
    _
  %v32 = vld [vmem:[%s0] sm:$0x3]
  %v33 = vld [vmem:[%s1] sm:$0xff]
  %v34 = vld [vmem:[%s1 + $0x8] sm:$0xff]
  %v35 = vld [vmem:[%s1 + $0x10] sm:$0xff]
  %v36 = vld [vmem:[%s1 + $0x18] sm:$0xff]
  %v37 = vld [vmem:[%s2] sm:$0x1]
  %v39 = vperm.slane %v37, 0
  %vm41 = vcmask 261120
  %v43 = vsel %vm41, %v32, 0
  %45 = vmatpush.msra.mxu0 0.0
  %46 = vmatpush.msra.mxu0 0.0
  %47 = vmatpush.msra.mxu0 0.0
  %48 = vmatpush.msra.mxu0 0.0
  %49 = vmatpush.msra.mxu0 0.0
  %50 = vmatpush.msra.mxu0 0.0
  %51 = vmatpush.msra.mxu0 0.0
  %52 = vmatpush.msra.mxu0 0.0
  %53 = vmatpush.msra.mxu0 0.0
  %54 = vmatpush.msra.mxu0 0.0
  %55 = vmatpush.msra.mxu0 0.0
  %56 = vmatpush.msra.mxu0 0.0
  %57 = vmatpush.msra.mxu0 %v36
  %58 = vmatpush.msra.mxu0 %v35
  %59 = vmatpush.msra.mxu0 %v34
  %60 = vmatpush.msra.mxu0 %v33
  %61 = vmatmul.f32.gmra.mxu0 %v43
  %v62 = vpop.f32.mrf.mxu0
  %v63 = vadd.f32 %v39, %v62
  %64 = vdwg.mxu0
  %v65 = vld [vmem:[%s3] sm:$0x1]
  %v67 = vperm.slane %v65, 0
  %v69 = vmul.f32 %v63, %v67
  %v70 = vld [vmem:[%s4] sm:$0x1]
  %v72 = vperm.slane %v70, 0
  %v74 = vadd.f32 %v69, %v72
  %vm75 = vcmp.gt.f32.partialorder %v74, 0.0
  %v76 = vmul.f32 %v74, 0.01
  %v77 = vsel %vm75, %v74, %v76
  %v78 = vld [vmem:[%s5] sm:$0xff]
  %v79 = vld [vmem:[%s5 + $0x8] sm:$0xff]
  %v80 = vld [vmem:[%s5 + $0x10] sm:$0xff]
  %v81 = vld [vmem:[%s5 + $0x18] sm:$0xff]
  %v82 = vld [vmem:[%s6] sm:$0x1]
  %v84 = vperm.slane %v82, 0
  %v87 = vsel %vm41, %v77, 0
  %89 = vmatpush.msra.mxu0 0.0
  %90 = vmatpush.msra.mxu0 0.0
  %91 = vmatpush.msra.mxu0 0.0
  %92 = vmatpush.msra.mxu0 0.0
  %93 = vmatpush.msra.mxu0 0.0
  %94 = vmatpush.msra.mxu0 0.0
  %95 = vmatpush.msra.mxu0 0.0
  %96 = vmatpush.msra.mxu0 0.0
  %97 = vmatpush.msra.mxu0 0.0
  %98 = vmatpush.msra.mxu0 0.0
  %99 = vmatpush.msra.mxu0 0.0
  %100 = vmatpush.msra.mxu0 0.0
  %101 = vmatpush.msra.mxu0 %v81
  %102 = vmatpush.msra.mxu0 %v80
  %103 = vmatpush.msra.mxu0 %v79
  %104 = vmatpush.msra.mxu0 %v78
  %105 = vmatmul.f32.gmra.mxu0 %v87
  %v106 = vpop.f32.mrf.mxu0
  %v107 = vadd.f32 %v84, %v106
  %108 = vdwg.mxu0
  %v109 = vld [vmem:[%s7] sm:$0x1]
  %v111 = vperm.slane %v109, 0
  %v113 = vmul.f32 %v107, %v111
  %v114 = vld [vmem:[%s8] sm:$0x1]
  %v116 = vperm.slane %v114, 0
  %v118 = vadd.f32 %v113, %v116
  %119 = vst [vmem:[%s9] sm:$0x3] %v118
  // Predicated region
  $region38: #{base_cnn_forward.3} parent=0 // pred_check
    _
  $region39: #{base_cnn_forward.3} parent=0 // pred_check_branch
    %121 = sbr.rel (0) target = $region41
  $region40: #{base_cnn_forward.3} parent=0 // pred_region
    _
  $region41: #{base_cnn_forward.3} parent=0 // pred_fallthru
    _
  // Predicated region
  $region42: #{base_cnn_forward.3} parent=0 // pred_check
    _
  $region43: #{base_cnn_forward.3} parent=0 // pred_check_branch
    %123 = sbr.rel (0) target = $region45
  $region44: #{base_cnn_forward.3} parent=0 // pred_region
    _
  $region45: #{base_cnn_forward.3} parent=0 // pred_fallthru
    _

// kernel: base_cnn_forward.2
$region0: #{base_cnn_forward.2}
  #allocation0 [shape = 'u32[]', space=smem, size = 0x4, offset = 0x4, fixed_abs, tag = 'smem constant byte address 0x4 - core index']
  #allocation1 [shape = 'u32[72,128]{1,0:T(1,128)}', space=vmem, size = 0x9000, scoped, tag = 'internal scratch']
  #allocation2 [shape = 'f32[32,256]{1,0:T(8,128)}', space=vmem, size = 0x8000, scoped, tag = 'scratch operand']
  #allocation3 [shape = 'f32[1]{0:T(128)S(6)}', space=smem, size = 0x200, scoped, tag = 'scoped memory for base_cnn_forward.2']
  %s0 = inlined_call_operand.<no memory space> [shape: f32[1], index: 0, kind: input, shape index: {}]
  %s1 = inlined_call_operand.vmem [shape: f32[2,4,290], index: 1, kind: input, shape index: {}]
  %s2 = inlined_call_operand.vmem [shape: f32[9,32,4], index: 2, kind: input, shape index: {}]
  %s3 = inlined_call_operand.vmem [shape: f32[32,1], index: 3, kind: input, shape index: {}]
  %s4 = inlined_call_operand.vmem [shape: f32[2,256], index: 4, kind: input, shape index: {}]
  %s5 = inlined_call_operand.vmem [shape: f32[2,32,1], index: 5, kind: output, shape index: {}]
  %s6 = sld [smem:[#allocation0]]
  $region53: #{base_cnn_forward.2} parent=0
    _
  %s8 = ssub.s32 1, %s6
  %s9 = scalar_select 0, %s8, %s6
  %10 = sst [smem:[#allocation3]] %s0
  loop: start=0, step=1, limit=4
  $region2: #{base_cnn_forward.2} parent=0 // loop_pre_header
    _
  $region3: #{base_cnn_forward.2} parent=0 // loop_header
    %s12 = sphi 0, %s16
    %p13 = scmp.ge.s32.totalorder %s12, 4
    %s20 = sphi 0, %s20
    %s22 = sphi 0, %s20
    %s23 = sphi 0, %s22
    %s37 = sphi 0, %s23
    %s43 = sphi 0, %s45
    %s46 = sphi 0, %s43
    %s47 = sphi 0, %s46
    %s63 = sphi 0, %s47
    %s67 = sphi 0, %s67
    %s69 = sphi 0, %s67
    %s70 = sphi 0, %s69
    %s84 = sphi 0, %s70
    %s88 = sphi 0, %s88
    %s90 = sphi 0, %s88
    %s91 = sphi 0, %s90
    %s105 = sphi 0, %s91
    %s109 = sphi 0, %s109
    %s111 = sphi 0, %s109
    %s112 = sphi 0, %s111
    %s126 = sphi 0, %s112
    %s132 = sphi 0, %s134
    %s135 = sphi 0, %s132
    %s136 = sphi 0, %s135
    %s152 = sphi 0, %s136
  $region4: #{base_cnn_forward.2} parent=0 // loop_header_branch
    %15 = sbr.rel (%p13) target = $region8
  $region5: #{base_cnn_forward.2} parent=0 // loop_body
    %s17 = ssub.s32 %s12, 1
    %s18 = ssub.s32 %s12, 2
    %s19 = sadd.s32 %s12, 1
    %s21 = sadd.s32 %s20, 1
    %p24 = scmp.eq.s32.totalorder %s12, 1
    %p25 = scmp.ne.s32.totalorder %s20, %s22
    %p26 = scmp.eq.s32.totalorder %s12, 0
    %p27 = por %p25, %p26
    %p28 = scmp.ne.s32.totalorder %s20, %s22
    %p29 = scmp.eq.s32.totalorder %s17, 1
    %p30 = por %p28, %p29
    %p31 = scmp.ne.s32.totalorder %s22, %s23
    %p32 = scmp.eq.s32.totalorder %s17, 0
    %p33 = por %p31, %p32
    %p34 = scmp.ne.s32.totalorder %s22, %s23
    %p35 = scmp.eq.s32.totalorder %s18, 1
    %p36 = por %p34, %p35
    %p38 = scmp.ne.s32.totalorder %s23, %s37
    %p39 = scmp.eq.s32.totalorder %s18, 0
    %p40 = por %p38, %p39
    %s41 = ssub.s32 %s12, %s19
    %p42 = scmp.eq.s32.totalorder %s41, 0
    %s44 = sadd.s32 %s43, 1
    %s45 = scalar_select %p42, %s43, %s44
    %p48 = pneg %p42
    %p49 = scmp.eq.s32.totalorder %s12, 1
    %p50 = por %p48, %p49
    %p51 = scmp.ne.s32.totalorder %s43, %s46
    %p52 = scmp.eq.s32.totalorder %s12, 0
    %p53 = por %p51, %p52
    %p54 = scmp.ne.s32.totalorder %s43, %s46
    %p55 = scmp.eq.s32.totalorder %s17, 1
    %p56 = por %p54, %p55
    %p57 = scmp.ne.s32.totalorder %s46, %s47
    %p58 = scmp.eq.s32.totalorder %s17, 0
    %p59 = por %p57, %p58
    %p60 = scmp.ne.s32.totalorder %s46, %s47
    %p61 = scmp.eq.s32.totalorder %s18, 1
    %p62 = por %p60, %p61
    %p64 = scmp.ne.s32.totalorder %s47, %s63
    %p65 = scmp.eq.s32.totalorder %s18, 0
    %p66 = por %p64, %p65
    %s68 = sadd.s32 %s67, 1
    %p71 = scmp.eq.s32.totalorder %s12, 1
    %p72 = scmp.ne.s32.totalorder %s67, %s69
    %p73 = scmp.eq.s32.totalorder %s12, 0
    %p74 = por %p72, %p73
    %p75 = scmp.ne.s32.totalorder %s67, %s69
    %p76 = scmp.eq.s32.totalorder %s17, 1
    %p77 = por %p75, %p76
    %p78 = scmp.ne.s32.totalorder %s69, %s70
    %p79 = scmp.eq.s32.totalorder %s17, 0
    %p80 = por %p78, %p79
    %p81 = scmp.ne.s32.totalorder %s69, %s70
    %p82 = scmp.eq.s32.totalorder %s18, 1
    %p83 = por %p81, %p82
    %p85 = scmp.ne.s32.totalorder %s70, %s84
    %p86 = scmp.eq.s32.totalorder %s18, 0
    %p87 = por %p85, %p86
    %s89 = sadd.s32 %s88, 1
    %p92 = scmp.eq.s32.totalorder %s12, 1
    %p93 = scmp.ne.s32.totalorder %s88, %s90
    %p94 = scmp.eq.s32.totalorder %s12, 0
    %p95 = por %p93, %p94
    %p96 = scmp.ne.s32.totalorder %s88, %s90
    %p97 = scmp.eq.s32.totalorder %s17, 1
    %p98 = por %p96, %p97
    %p99 = scmp.ne.s32.totalorder %s90, %s91
    %p100 = scmp.eq.s32.totalorder %s17, 0
    %p101 = por %p99, %p100
    %p102 = scmp.ne.s32.totalorder %s90, %s91
    %p103 = scmp.eq.s32.totalorder %s18, 1
    %p104 = por %p102, %p103
    %p106 = scmp.ne.s32.totalorder %s91, %s105
    %p107 = scmp.eq.s32.totalorder %s18, 0
    %p108 = por %p106, %p107
    %s110 = sadd.s32 %s109, 1
    %p113 = scmp.eq.s32.totalorder %s12, 1
    %p114 = scmp.ne.s32.totalorder %s109, %s111
    %p115 = scmp.eq.s32.totalorder %s12, 0
    %p116 = por %p114, %p115
    %p117 = scmp.ne.s32.totalorder %s109, %s111
    %p118 = scmp.eq.s32.totalorder %s17, 1
    %p119 = por %p117, %p118
    %p120 = scmp.ne.s32.totalorder %s111, %s112
    %p121 = scmp.eq.s32.totalorder %s17, 0
    %p122 = por %p120, %p121
    %p123 = scmp.ne.s32.totalorder %s111, %s112
    %p124 = scmp.eq.s32.totalorder %s18, 1
    %p125 = por %p123, %p124
    %p127 = scmp.ne.s32.totalorder %s112, %s126
    %p128 = scmp.eq.s32.totalorder %s18, 0
    %p129 = por %p127, %p128
    %s130 = ssub.s32 %s12, %s19
    %p131 = scmp.eq.s32.totalorder %s130, 0
    %s133 = sadd.s32 %s132, 1
    %s134 = scalar_select %p131, %s132, %s133
    %p137 = pneg %p131
    %p138 = scmp.eq.s32.totalorder %s12, 1
    %p139 = por %p137, %p138
    %p140 = scmp.ne.s32.totalorder %s132, %s135
    %p141 = scmp.eq.s32.totalorder %s12, 0
    %p142 = por %p140, %p141
    %p143 = scmp.ne.s32.totalorder %s132, %s135
    %p144 = scmp.eq.s32.totalorder %s17, 1
    %p145 = por %p143, %p144
    %p146 = scmp.ne.s32.totalorder %s135, %s136
    %p147 = scmp.eq.s32.totalorder %s17, 0
    %p148 = por %p146, %p147
    %p149 = scmp.ne.s32.totalorder %s135, %s136
    %p150 = scmp.eq.s32.totalorder %s18, 1
    %p151 = por %p149, %p150
    %p153 = scmp.ne.s32.totalorder %s136, %s152
    %p154 = scmp.eq.s32.totalorder %s18, 0
    %p155 = por %p153, %p154
    %p156 = scmp.le.s32.totalorder 1, %s12
    %p157 = scmp.lt.s32.totalorder %s12, 3
    %p158 = pnand %p156, %p157
    %p159 = pneg %p158
    // Predicated region
    $region9: #{base_cnn_forward.2} parent=5 // pred_check
      _
    $region10: #{base_cnn_forward.2} parent=5 // pred_check_branch
      %161 = sbr.rel (%p158) target = $region12
    $region11: #{base_cnn_forward.2} parent=5 // pred_region
      %s162 = ssub.s32 %s12, 1
      // Predicated region
      $region13: #{base_cnn_forward.2} parent=11 // pred_check
        %p163 = pneg %p33
      $region14: #{base_cnn_forward.2} parent=11 // pred_check_branch
        %165 = sbr.rel (%p163) target = $region16
      $region15: #{base_cnn_forward.2} parent=11 // pred_region
        _
      $region16: #{base_cnn_forward.2} parent=11 // pred_fallthru
        _
      // Predicated region
      $region17: #{base_cnn_forward.2} parent=11 // pred_check
        %p166 = pneg %p80
      $region18: #{base_cnn_forward.2} parent=11 // pred_check_branch
        %168 = sbr.rel (%p166) target = $region20
      $region19: #{base_cnn_forward.2} parent=11 // pred_region
        _
      $region20: #{base_cnn_forward.2} parent=11 // pred_fallthru
        _
      // Predicated region
      $region21: #{base_cnn_forward.2} parent=11 // pred_check
        %p169 = pneg %p101
      $region22: #{base_cnn_forward.2} parent=11 // pred_check_branch
        %171 = sbr.rel (%p169) target = $region24
      $region23: #{base_cnn_forward.2} parent=11 // pred_region
        _
      $region24: #{base_cnn_forward.2} parent=11 // pred_fallthru
        _
      // Predicated region
      $region25: #{base_cnn_forward.2} parent=11 // pred_check
        %p172 = pneg %p122
      $region26: #{base_cnn_forward.2} parent=11 // pred_check_branch
        %174 = sbr.rel (%p172) target = $region28
      $region27: #{base_cnn_forward.2} parent=11 // pred_region
        _
      $region28: #{base_cnn_forward.2} parent=11 // pred_fallthru
        _
    $region12: #{base_cnn_forward.2} parent=5 // pred_fallthru
      _
    %p175 = scmp.lt.s32.totalorder %s12, 2
    // Predicated region
    $region29: #{base_cnn_forward.2} parent=5 // pred_check
      %p176 = pneg %p175
    $region30: #{base_cnn_forward.2} parent=5 // pred_check_branch
      %178 = sbr.rel (%p176) target = $region32
    $region31: #{base_cnn_forward.2} parent=5 // pred_region
      // Predicated region
      $region33: #{base_cnn_forward.2} parent=31 // pred_check
        %p179 = pneg %p53
      $region34: #{base_cnn_forward.2} parent=31 // pred_check_branch
        %181 = sbr.rel (%p179) target = $region36
      $region35: #{base_cnn_forward.2} parent=31 // pred_region
        %p182 = scmp.lt.s32.totalorder %s12, 1
        %s183 = scalar_select %p182, %s12, 1
        %s184 = smul.addr %s183, 3
        %s185 = smul.addr %s184, 4
        %s186 = scalar_lea.vmem %s1, %s185
      $region36: #{base_cnn_forward.2} parent=31 // pred_fallthru
        _
    $region32: #{base_cnn_forward.2} parent=5 // pred_fallthru
      _
    %p187 = scmp.le.s32.totalorder 1, %s12
    %p188 = scmp.lt.s32.totalorder %s12, 3
    %p189 = pnand %p187, %p188
    %p190 = pneg %p189
    // Predicated region
    $region37: #{base_cnn_forward.2} parent=5 // pred_check
      _
    $region38: #{base_cnn_forward.2} parent=5 // pred_check_branch
      %192 = sbr.rel (%p189) target = $region40
    $region39: #{base_cnn_forward.2} parent=5 // pred_region
      %s193 = ssub.s32 %s12, 1
      %p194 = pneg %p33
      %p195 = pneg %p30
      %p196 = scmp.lt.s32.totalorder %s17, 1
      %s197 = scalar_select %p196, %s17, 1
      %s198 = smul.addr %s197, 3
      %s199 = smul.addr %s198, 4
      %s200 = scalar_lea.vmem %s1, %s199
      %p201 = pneg %p59
      %p202 = pneg %p56
      %p203 = pneg %p80
      %p204 = pneg %p77
      %p205 = pneg %p101
      %p206 = pneg %p98
      %p207 = pneg %p122
      %p208 = pneg %p119
      %p209 = pneg %p148
      %p210 = pneg %p145
      %p211 = scmp.lt.s32.totalorder %s17, 1
      %s212 = scalar_select %p211, %s17, 1
      %s213 = smul.addr %s212, 4
      %s214 = smul.addr %s213, 8
      %s215 = scalar_lea.vmem %s5, %s214
      %p216 = scmp.lt.s32.totalorder %s17, 1
      %s217 = scalar_select %p216, %s17, 1
      %s218 = smul.addr %s217, 3
      %s219 = smul.addr %s218, 4
      %s220 = scalar_lea.vmem %s1, %s219
      %p221 = scmp.lt.s32.totalorder %s17, 1
      %s222 = scalar_select %p221, %s17, 1
      %s223 = smul.addr %s222, 4
      %s224 = smul.addr %s223, 8
      %s225 = scalar_lea.vmem %s5, %s224
      %v226 = vld [vmem:[%s220] sm:$0xff]
      %v227 = vld [vmem:[%s4] ss:$2 sm:$0x3]
      %v229 = vperm.slane %v227, 0
      %v230 = vperm.slane %v227, 1
      %v231 = vrot.slane %v230, 4
      %vm232 = vcmask 1043456
      %v233 = vsel %vm232, %v229, %v231
      %v235 = vmul.f32 %v226, %v233
      %v236 = vld [vmem:[%s2] sm:$0xff]
      %v237 = vld [vmem:[%s2 + $0x8] sm:$0xff]
      %v238 = vld [vmem:[%s2 + $0x10] sm:$0xff]
      %v239 = vld [vmem:[%s2 + $0x18] sm:$0xff]
      %241 = vst [vmem:[#allocation1] ss:$2 sm:$0xff] %v235
      %v242 = vld.sshfl [vmem:[#allocation1] sm:$0xff pattern:$0x75316420]
      %v243 = vld.sshfl [vmem:[#allocation1 + $0x8] sm:$0xff pattern:$0x75316420]
      %vm244 = vcmask 31744
      %v246 = vsel %vm244, %v236, 0
      %v249 = vsel %vm244, %v237, 0
      %v252 = vsel %vm244, %v238, 0
      %v255 = vsel %vm244, %v239, 0
      %v257 = vsel %vm232, %v242, 0
      %v259 = vsel %vm232, %v243, 0
      %261 = vmatpush.msra.mxu0 0.0
      %262 = vmatpush.msra.mxu0 0.0
      %263 = vmatpush.msra.mxu0 0.0
      %264 = vmatpush.msra.mxu0 0.0
      %265 = vmatpush.msra.mxu0 0.0
      %266 = vmatpush.msra.mxu0 0.0
      %267 = vmatpush.msra.mxu0 0.0
      %268 = vmatpush.msra.mxu0 0.0
      %269 = vmatpush.msra.mxu0 0.0
      %270 = vmatpush.msra.mxu0 0.0
      %271 = vmatpush.msra.mxu0 0.0
      %272 = vmatpush.msra.mxu0 0.0
      %273 = vmatpush.msra.mxu0 0.0
      %274 = vmatpush.msra.mxu0 0.0
      %275 = vmatpush.msra.mxu0 0.0
      %276 = vmatpush.msra.mxu0 %v257
      %277 = vmatmul.f32.gmra.mxu0 %v246
      %v278 = vpop.f32.mrf.mxu0
      %v279 = vadd.f32 0.0, %v278
      %280 = vmatmul.f32.gmra.mxu0 %v249
      %v281 = vpop.f32.mrf.mxu0
      %v282 = vadd.f32 0.0, %v281
      %283 = vmatmul.f32.gmra.mxu0 %v252
      %v284 = vpop.f32.mrf.mxu0
      %v285 = vadd.f32 0.0, %v284
      %286 = vmatmul.f32.gmra.mxu0 %v255
      %v287 = vpop.f32.mrf.mxu0
      %v288 = vadd.f32 0.0, %v287
      %289 = vdwg.mxu0
      %290 = vmatpush.msra.mxu0 0.0
      %291 = vmatpush.msra.mxu0 0.0
      %292 = vmatpush.msra.mxu0 0.0
      %293 = vmatpush.msra.mxu0 0.0
      %294 = vmatpush.msra.mxu0 0.0
      %295 = vmatpush.msra.mxu0 0.0
      %296 = vmatpush.msra.mxu0 0.0
      %297 = vmatpush.msra.mxu0 0.0
      %298 = vmatpush.msra.mxu0 0.0
      %299 = vmatpush.msra.mxu0 0.0
      %300 = vmatpush.msra.mxu0 0.0
      %301 = vmatpush.msra.mxu0 0.0
      %302 = vmatpush.msra.mxu0 0.0
      %303 = vmatpush.msra.mxu0 0.0
      %304 = vmatpush.msra.mxu0 0.0
      %305 = vmatpush.msra.mxu0 %v259
      %306 = vmatmul.f32.gmra.mxu0 %v246
      %v307 = vpop.f32.mrf.mxu0
      %v308 = vadd.f32 0.0, %v307
      %309 = vmatmul.f32.gmra.mxu0 %v249
      %v310 = vpop.f32.mrf.mxu0
      %v311 = vadd.f32 0.0, %v310
      %312 = vmatmul.f32.gmra.mxu0 %v252
      %v313 = vpop.f32.mrf.mxu0
      %v314 = vadd.f32 0.0, %v313
      %315 = vmatmul.f32.gmra.mxu0 %v255
      %v316 = vpop.f32.mrf.mxu0
      %v317 = vadd.f32 0.0, %v316
      %318 = vdwg.mxu0
      %319 = vst [vmem:[#allocation2] sm:$0xff] %v279
      %320 = vst [vmem:[#allocation2 + $0x8] sm:$0xff] %v308
      %321 = vst [vmem:[#allocation2 + $0x10] sm:$0xff] %v282
      %322 = vst [vmem:[#allocation2 + $0x18] sm:$0xff] %v311
      %323 = vst [vmem:[#allocation2 + $0x20] sm:$0xff] %v285
      %324 = vst [vmem:[#allocation2 + $0x28] sm:$0xff] %v314
      %325 = vst [vmem:[#allocation2 + $0x30] sm:$0xff] %v288
      %326 = vst [vmem:[#allocation2 + $0x38] sm:$0xff] %v317
      %v327 = vld [vmem:[%s220] sm:$0xff]
      %v328 = vld [vmem:[%s220 + $0x8] sm:$0xf]
      %s329 = scalar_lea.vmem %s2, 32
      %v330 = vld [vmem:[%s329] sm:$0xff]
      %v331 = vld [vmem:[%s329 + $0x8] sm:$0xff]
      %v332 = vld [vmem:[%s329 + $0x10] sm:$0xff]
      %v333 = vld [vmem:[%s329 + $0x18] sm:$0xff]
      %336 = vst [vmem:[#allocation1] ss:$2 sm:$0xff] %v327
      %s337 = scalar_lea.vmem [#allocation1], 16
      %338 = vst [vmem:[%s337] ss:$2 sm:$0xff] %v328
      %v339 = vld.sshfl [vmem:[#allocation1] sm:$0xff pattern:$0x75316420]
      %v340 = vld.sshfl [vmem:[#allocation1 + $0x8] sm:$0xff pattern:$0x75316420]
      %v341 = vld.sshfl [vmem:[#allocation1 + $0x10] sm:$0xff pattern:$0x75316420]
      %342 = vrot.lane.b32.xlu0 %v339, 127
      %v343 = vpop.permute.xlu0 %342
      %344 = vrot.lane.b32.xlu0 %v340, 127
      %v345 = vpop.permute.xlu0 %344
      %346 = vrot.lane.b32.xlu0 %v341, 127
      %v347 = vpop.permute.xlu0 %346
      %vm348 = vcmask 1039360
      %v349 = vsel %vm348, %v343, %v345
      %v350 = vsel %vm348, %v345, %v347
      %v352 = vsel %vm244, %v330, 0
      %v355 = vsel %vm244, %v331, 0
      %v358 = vsel %vm244, %v332, 0
      %v361 = vsel %vm244, %v333, 0
      %v363 = vsel %vm232, %v349, 0
      %v365 = vsel %vm232, %v350, 0
      %367 = vmatpush.msra.mxu0 0.0
      %368 = vmatpush.msra.mxu0 0.0
      %369 = vmatpush.msra.mxu0 0.0
      %370 = vmatpush.msra.mxu0 0.0
      %371 = vmatpush.msra.mxu0 0.0
      %372 = vmatpush.msra.mxu0 0.0
      %373 = vmatpush.msra.mxu0 0.0
      %374 = vmatpush.msra.mxu0 0.0
      %375 = vmatpush.msra.mxu0 0.0
      %376 = vmatpush.msra.mxu0 0.0
      %377 = vmatpush.msra.mxu0 0.0
      %378 = vmatpush.msra.mxu0 0.0
      %379 = vmatpush.msra.mxu0 0.0
      %380 = vmatpush.msra.mxu0 0.0
      %381 = vmatpush.msra.mxu0 0.0
      %382 = vmatpush.msra.mxu0 %v363
      %383 = vmatmul.f32.gmra.mxu0 %v352
      %v384 = vpop.f32.mrf.mxu0
      %v385 = vadd.f32 0.0, %v384
      %386 = vmatmul.f32.gmra.mxu0 %v355
      %v387 = vpop.f32.mrf.mxu0
      %v388 = vadd.f32 0.0, %v387
      %389 = vmatmul.f32.gmra.mxu0 %v358
      %v390 = vpop.f32.mrf.mxu0
      %v391 = vadd.f32 0.0, %v390
      %392 = vmatmul.f32.gmra.mxu0 %v361
      %v393 = vpop.f32.mrf.mxu0
      %v394 = vadd.f32 0.0, %v393
      %395 = vdwg.mxu0
      %396 = vmatpush.msra.mxu0 0.0
      %397 = vmatpush.msra.mxu0 0.0
      %398 = vmatpush.msra.mxu0 0.0
      %399 = vmatpush.msra.mxu0 0.0
      %400 = vmatpush.msra.mxu0 0.0
      %401 = vmatpush.msra.mxu0 0.0
      %402 = vmatpush.msra.mxu0 0.0
      %403 = vmatpush.msra.mxu0 0.0
      %404 = vmatpush.msra.mxu0 0.0
      %405 = vmatpush.msra.mxu0 0.0
      %406 = vmatpush.msra.mxu0 0.0
      %407 = vmatpush.msra.mxu0 0.0
      %408 = vmatpush.msra.mxu0 0.0
      %409 = vmatpush.msra.mxu0 0.0
      %410 = vmatpush.msra.mxu0 0.0
      %411 = vmatpush.msra.mxu0 %v365
      %412 = vmatmul.f32.gmra.mxu0 %v352
      %v413 = vpop.f32.mrf.mxu0
      %v414 = vadd.f32 0.0, %v413
      %415 = vmatmul.f32.gmra.mxu0 %v355
      %v416 = vpop.f32.mrf.mxu0
      %v417 = vadd.f32 0.0, %v416
      %418 = vmatmul.f32.gmra.mxu0 %v358
      %v419 = vpop.f32.mrf.mxu0
      %v420 = vadd.f32 0.0, %v419
      %421 = vmatmul.f32.gmra.mxu0 %v361
      %v422 = vpop.f32.mrf.mxu0
      %v423 = vadd.f32 0.0, %v422
      %424 = vdwg.mxu0
      %v425 = vld [vmem:[#allocation2] sm:$0xff]
      %v426 = vld [vmem:[#allocation2 + $0x8] sm:$0xff]
      %v427 = vld [vmem:[#allocation2 + $0x10] sm:$0xff]
      %v428 = vld [vmem:[#allocation2 + $0x18] sm:$0xff]
      %v429 = vld [vmem:[#allocation2 + $0x20] sm:$0xff]
      %v430 = vld [vmem:[#allocation2 + $0x28] sm:$0xff]
      %v431 = vld [vmem:[#allocation2 + $0x30] sm:$0xff]
      %v432 = vld [vmem:[#allocation2 + $0x38] sm:$0xff]
      %v433 = vadd.f32 %v425, %v385
      %v434 = vadd.f32 %v426, %v414
      %v435 = vadd.f32 %v427, %v388
      %v436 = vadd.f32 %v428, %v417
      %v437 = vadd.f32 %v429, %v391
      %v438 = vadd.f32 %v430, %v420
      %v439 = vadd.f32 %v431, %v394
      %v440 = vadd.f32 %v432, %v423
      %441 = vst [vmem:[#allocation2] sm:$0xff] %v433
      %442 = vst [vmem:[#allocation2 + $0x8] sm:$0xff] %v434
      %443 = vst [vmem:[#allocation2 + $0x10] sm:$0xff] %v435
      %444 = vst [vmem:[#allocation2 + $0x18] sm:$0xff] %v436
      %445 = vst [vmem:[#allocation2 + $0x20] sm:$0xff] %v437
      %446 = vst [vmem:[#allocation2 + $0x28] sm:$0xff] %v438
      %447 = vst [vmem:[#allocation2 + $0x30] sm:$0xff] %v439
      %448 = vst [vmem:[#allocation2 + $0x38] sm:$0xff] %v440
      %v449 = vld [vmem:[%s220] sm:$0xff]
      %v450 = vld [vmem:[%s220 + $0x8] sm:$0xf]
      %s451 = scalar_lea.vmem %s4, 1
      %v452 = vld [vmem:[%s451] ss:$2 sm:$0x3]
      %v454 = vperm.slane %v452, 0
      %v455 = vperm.slane %v452, 1
      %v456 = vrot.slane %v455, 4
      %v457 = vsel %vm232, %v454, %v456
      %458 = vrot.lane.b32.xlu0 %v457, 2
      %v459 = vpop.permute.xlu0 %458
      %v460 = vrot.slane %v459, 4
      %vm461 = vcmask 15360
      %v462 = vsel %vm461, %v460, %v459
      %v465 = vmul.f32 %v449, %v462
      %v466 = vmul.f32 %v450, %v460
      %s467 = scalar_lea.vmem %s2, 64
      %v468 = vld [vmem:[%s467] sm:$0xff]
      %v469 = vld [vmem:[%s467 + $0x8] sm:$0xff]
      %v470 = vld [vmem:[%s467 + $0x10] sm:$0xff]
      %v471 = vld [vmem:[%s467 + $0x18] sm:$0xff]
      %474 = vst [vmem:[#allocation1] ss:$2 sm:$0xff] %v465
      %s475 = scalar_lea.vmem [#allocation1], 16
      %476 = vst [vmem:[%s475] ss:$2 sm:$0xff] %v466
      %v477 = vld.sshfl [vmem:[#allocation1] sm:$0xff pattern:$0x75316420]
      %v478 = vld.sshfl [vmem:[#allocation1 + $0x8] sm:$0xff pattern:$0x75316420]
      %v479 = vld.sshfl [vmem:[#allocation1 + $0x10] sm:$0xff pattern:$0x75316420]
      %480 = vrot.lane.b32.xlu0 %v477, 126
      %v481 = vpop.permute.xlu0 %480
      %482 = vrot.lane.b32.xlu0 %v478, 126
      %v483 = vpop.permute.xlu0 %482
      %484 = vrot.lane.b32.xlu0 %v479, 126
      %v485 = vpop.permute.xlu0 %484
      %vm486 = vcmask 1031168
      %v487 = vsel %vm486, %v481, %v483
      %v488 = vsel %vm486, %v483, %v485
      %v490 = vsel %vm244, %v468, 0
      %v493 = vsel %vm244, %v469, 0
      %v496 = vsel %vm244, %v470, 0
      %v499 = vsel %vm244, %v471, 0
      %v501 = vsel %vm232, %v487, 0
      %v503 = vsel %vm232, %v488, 0
      %505 = vmatpush.msra.mxu0 0.0
      %506 = vmatpush.msra.mxu0 0.0
      %507 = vmatpush.msra.mxu0 0.0
      %508 = vmatpush.msra.mxu0 0.0
      %509 = vmatpush.msra.mxu0 0.0
      %510 = vmatpush.msra.mxu0 0.0
      %511 = vmatpush.msra.mxu0 0.0
      %512 = vmatpush.msra.mxu0 0.0
      %513 = vmatpush.msra.mxu0 0.0
      %514 = vmatpush.msra.mxu0 0.0
      %515 = vmatpush.msra.mxu0 0.0
      %516 = vmatpush.msra.mxu0 0.0
      %517 = vmatpush.msra.mxu0 0.0
      %518 = vmatpush.msra.mxu0 0.0
      %519 = vmatpush.msra.mxu0 0.0
      %520 = vmatpush.msra.mxu0 %v501
      %521 = vmatmul.f32.gmra.mxu0 %v490
      %v522 = vpop.f32.mrf.mxu0
      %v523 = vadd.f32 0.0, %v522
      %524 = vmatmul.f32.gmra.mxu0 %v493
      %v525 = vpop.f32.mrf.mxu0
      %v526 = vadd.f32 0.0, %v525
      %527 = vmatmul.f32.gmra.mxu0 %v496
      %v528 = vpop.f32.mrf.mxu0
      %v529 = vadd.f32 0.0, %v528
      %530 = vmatmul.f32.gmra.mxu0 %v499
      %v531 = vpop.f32.mrf.mxu0
      %v532 = vadd.f32 0.0, %v531
      %533 = vdwg.mxu0
      %534 = vmatpush.msra.mxu0 0.0
      %535 = vmatpush.msra.mxu0 0.0
      %536 = vmatpush.msra.mxu0 0.0
      %537 = vmatpush.msra.mxu0 0.0
      %538 = vmatpush.msra.mxu0 0.0
      %539 = vmatpush.msra.mxu0 0.0
      %540 = vmatpush.msra.mxu0 0.0
      %541 = vmatpush.msra.mxu0 0.0
      %542 = vmatpush.msra.mxu0 0.0
      %543 = vmatpush.msra.mxu0 0.0
      %544 = vmatpush.msra.mxu0 0.0
      %545 = vmatpush.msra.mxu0 0.0
      %546 = vmatpush.msra.mxu0 0.0
      %547 = vmatpush.msra.mxu0 0.0
      %548 = vmatpush.msra.mxu0 0.0
      %549 = vmatpush.msra.mxu0 %v503
      %550 = vmatmul.f32.gmra.mxu0 %v490
      %v551 = vpop.f32.mrf.mxu0
      %v552 = vadd.f32 0.0, %v551
      %553 = vmatmul.f32.gmra.mxu0 %v493
      %v554 = vpop.f32.mrf.mxu0
      %v555 = vadd.f32 0.0, %v554
      %556 = vmatmul.f32.gmra.mxu0 %v496
      %v557 = vpop.f32.mrf.mxu0
      %v558 = vadd.f32 0.0, %v557
      %559 = vmatmul.f32.gmra.mxu0 %v499
      %v560 = vpop.f32.mrf.mxu0
      %v561 = vadd.f32 0.0, %v560
      %562 = vdwg.mxu0
      %v563 = vld [vmem:[#allocation2] sm:$0xff]
      %v564 = vld [vmem:[#allocation2 + $0x8] sm:$0xff]
      %v565 = vld [vmem:[#allocation2 + $0x10] sm:$0xff]
      %v566 = vld [vmem:[#allocation2 + $0x18] sm:$0xff]
      %v567 = vld [vmem:[#allocation2 + $0x20] sm:$0xff]
      %v568 = vld [vmem:[#allocation2 + $0x28] sm:$0xff]
      %v569 = vld [vmem:[#allocation2 + $0x30] sm:$0xff]
      %v570 = vld [vmem:[#allocation2 + $0x38] sm:$0xff]
      %v571 = vadd.f32 %v563, %v523
      %v572 = vadd.f32 %v564, %v552
      %v573 = vadd.f32 %v565, %v526
      %v574 = vadd.f32 %v566, %v555
      %v575 = vadd.f32 %v567, %v529
      %v576 = vadd.f32 %v568, %v558
      %v577 = vadd.f32 %v569, %v532
      %v578 = vadd.f32 %v570, %v561
      %579 = vst [vmem:[#allocation2] sm:$0xff] %v571
      %580 = vst [vmem:[#allocation2 + $0x8] sm:$0xff] %v572
      %581 = vst [vmem:[#allocation2 + $0x10] sm:$0xff] %v573
      %582 = vst [vmem:[#allocation2 + $0x18] sm:$0xff] %v574
      %583 = vst [vmem:[#allocation2 + $0x20] sm:$0xff] %v575
      %584 = vst [vmem:[#allocation2 + $0x28] sm:$0xff] %v576
      %585 = vst [vmem:[#allocation2 + $0x30] sm:$0xff] %v577
      %586 = vst [vmem:[#allocation2 + $0x38] sm:$0xff] %v578
      %v587 = vld [vmem:[%s220] sm:$0xff]
      %v588 = vld [vmem:[%s220 + $0x8] sm:$0xf]
      %v589 = vld [vmem:[%s4] ss:$2 sm:$0x3]
      %v591 = vperm.slane %v589, 0
      %v592 = vperm.slane %v589, 1
      %v593 = vrot.slane %v592, 4
      %v594 = vsel %vm232, %v591, %v593
      %595 = vrot.lane.b32.xlu0 %v594, 16
      %v596 = vpop.permute.xlu0 %595
      %v597 = vrot.slane %v596, 4
      %vm598 = vcmask 130048
      %v599 = vsel %vm598, %v597, %v596
      %v602 = vmul.f32 %v587, %v599
      %v603 = vmul.f32 %v588, %v597
      %s604 = scalar_lea.vmem %s2, 96
      %v605 = vld [vmem:[%s604] sm:$0xff]
      %v606 = vld [vmem:[%s604 + $0x8] sm:$0xff]
      %v607 = vld [vmem:[%s604 + $0x10] sm:$0xff]
      %v608 = vld [vmem:[%s604 + $0x18] sm:$0xff]
      %611 = vst [vmem:[#allocation1] ss:$2 sm:$0xff] %v602
      %s612 = scalar_lea.vmem [#allocation1], 16
      %613 = vst [vmem:[%s612] ss:$2 sm:$0xff] %v603
      %v614 = vld.sshfl [vmem:[#allocation1] sm:$0xff pattern:$0x75316420]
      %v615 = vld.sshfl [vmem:[#allocation1 + $0x8] sm:$0xff pattern:$0x75316420]
      %v616 = vld.sshfl [vmem:[#allocation1 + $0x10] sm:$0xff pattern:$0x75316420]
      %617 = vrot.lane.b32.xlu0 %v614, 112
      %v618 = vpop.permute.xlu0 %617
      %619 = vrot.lane.b32.xlu0 %v615, 112
      %v620 = vpop.permute.xlu0 %619
      %621 = vrot.lane.b32.xlu0 %v616, 112
      %v622 = vpop.permute.xlu0 %621
      %vm623 = vcmask 916480
      %v624 = vsel %vm623, %v618, %v620
      %v625 = vsel %vm623, %v620, %v622
      %v627 = vsel %vm244, %v605, 0
      %v630 = vsel %vm244, %v606, 0
      %v633 = vsel %vm244, %v607, 0
      %v636 = vsel %vm244, %v608, 0
      %v638 = vsel %vm232, %v624, 0
      %v640 = vsel %vm232, %v625, 0
      %642 = vmatpush.msra.mxu0 0.0
      %643 = vmatpush.msra.mxu0 0.0
      %644 = vmatpush.msra.mxu0 0.0
      %645 = vmatpush.msra.mxu0 0.0
      %646 = vmatpush.msra.mxu0 0.0
      %647 = vmatpush.msra.mxu0 0.0
      %648 = vmatpush.msra.mxu0 0.0
      %649 = vmatpush.msra.mxu0 0.0
      %650 = vmatpush.msra.mxu0 0.0
      %651 = vmatpush.msra.mxu0 0.0
      %652 = vmatpush.msra.mxu0 0.0
      %653 = vmatpush.msra.mxu0 0.0
      %654 = vmatpush.msra.mxu0 0.0
      %655 = vmatpush.msra.mxu0 0.0
      %656 = vmatpush.msra.mxu0 0.0
      %657 = vmatpush.msra.mxu0 %v638
      %658 = vmatmul.f32.gmra.mxu0 %v627
      %v659 = vpop.f32.mrf.mxu0
      %v660 = vadd.f32 0.0, %v659
      %661 = vmatmul.f32.gmra.mxu0 %v630
      %v662 = vpop.f32.mrf.mxu0
      %v663 = vadd.f32 0.0, %v662
      %664 = vmatmul.f32.gmra.mxu0 %v633
      %v665 = vpop.f32.mrf.mxu0
      %v666 = vadd.f32 0.0, %v665
      %667 = vmatmul.f32.gmra.mxu0 %v636
      %v668 = vpop.f32.mrf.mxu0
      %v669 = vadd.f32 0.0, %v668
      %670 = vdwg.mxu0
      %671 = vmatpush.msra.mxu0 0.0
      %672 = vmatpush.msra.mxu0 0.0
      %673 = vmatpush.msra.mxu0 0.0
      %674 = vmatpush.msra.mxu0 0.0
      %675 = vmatpush.msra.mxu0 0.0
      %676 = vmatpush.msra.mxu0 0.0
      %677 = vmatpush.msra.mxu0 0.0
      %678 = vmatpush.msra.mxu0 0.0
      %679 = vmatpush.msra.mxu0 0.0
      %680 = vmatpush.msra.mxu0 0.0
      %681 = vmatpush.msra.mxu0 0.0
      %682 = vmatpush.msra.mxu0 0.0
      %683 = vmatpush.msra.mxu0 0.0
      %684 = vmatpush.msra.mxu0 0.0
      %685 = vmatpush.msra.mxu0 0.0
      %686 = vmatpush.msra.mxu0 %v640
      %687 = vmatmul.f32.gmra.mxu0 %v627
      %v688 = vpop.f32.mrf.mxu0
      %v689 = vadd.f32 0.0, %v688
      %690 = vmatmul.f32.gmra.mxu0 %v630
      %v691 = vpop.f32.mrf.mxu0
      %v692 = vadd.f32 0.0, %v691
      %693 = vmatmul.f32.gmra.mxu0 %v633
      %v694 = vpop.f32.mrf.mxu0
      %v695 = vadd.f32 0.0, %v694
      %696 = vmatmul.f32.gmra.mxu0 %v636
      %v697 = vpop.f32.mrf.mxu0
      %v698 = vadd.f32 0.0, %v697
      %699 = vdwg.mxu0
      %v700 = vld [vmem:[#allocation2] sm:$0xff]
      %v701 = vld [vmem:[#allocation2 + $0x8] sm:$0xff]
      %v702 = vld [vmem:[#allocation2 + $0x10] sm:$0xff]
      %v703 = vld [vmem:[#allocation2 + $0x18] sm:$0xff]
      %v704 = vld [vmem:[#allocation2 + $0x20] sm:$0xff]
      %v705 = vld [vmem:[#allocation2 + $0x28] sm:$0xff]
      %v706 = vld [vmem:[#allocation2 + $0x30] sm:$0xff]
      %v707 = vld [vmem:[#allocation2 + $0x38] sm:$0xff]
      %v708 = vadd.f32 %v700, %v660
      %v709 = vadd.f32 %v701, %v689
      %v710 = vadd.f32 %v702, %v663
      %v711 = vadd.f32 %v703, %v692
      %v712 = vadd.f32 %v704, %v666
      %v713 = vadd.f32 %v705, %v695
      %v714 = vadd.f32 %v706, %v669
      %v715 = vadd.f32 %v707, %v698
      %716 = vst [vmem:[#allocation2] sm:$0xff] %v708
      %717 = vst [vmem:[#allocation2 + $0x8] sm:$0xff] %v709
      %718 = vst [vmem:[#allocation2 + $0x10] sm:$0xff] %v710
      %719 = vst [vmem:[#allocation2 + $0x18] sm:$0xff] %v711
      %720 = vst [vmem:[#allocation2 + $0x20] sm:$0xff] %v712
      %721 = vst [vmem:[#allocation2 + $0x28] sm:$0xff] %v713
      %722 = vst [vmem:[#allocation2 + $0x30] sm:$0xff] %v714
      %723 = vst [vmem:[#allocation2 + $0x38] sm:$0xff] %v715
      %v724 = vld [vmem:[%s220] sm:$0xff]
      %v725 = vld [vmem:[%s220 + $0x8] sm:$0xf]
      %s726 = scalar_lea.vmem %s2, 128
      %v727 = vld [vmem:[%s726] sm:$0xff]
      %v728 = vld [vmem:[%s726 + $0x8] sm:$0xff]
      %v729 = vld [vmem:[%s726 + $0x10] sm:$0xff]
      %v730 = vld [vmem:[%s726 + $0x18] sm:$0xff]
      %733 = vst [vmem:[#allocation1] ss:$2 sm:$0xff] %v724
      %s734 = scalar_lea.vmem [#allocation1], 16
      %735 = vst [vmem:[%s734] ss:$2 sm:$0xff] %v725
      %v736 = vld.sshfl [vmem:[#allocation1] sm:$0xff pattern:$0x75316420]
      %v737 = vld.sshfl [vmem:[#allocation1 + $0x8] sm:$0xff pattern:$0x75316420]
      %v738 = vld.sshfl [vmem:[#allocation1 + $0x10] sm:$0xff pattern:$0x75316420]
      %739 = vrot.lane.b32.xlu0 %v736, 111
      %v740 = vpop.permute.xlu0 %739
      %741 = vrot.lane.b32.xlu0 %v737, 111
      %v742 = vpop.permute.xlu0 %741
      %743 = vrot.lane.b32.xlu0 %v738, 111
      %v744 = vpop.permute.xlu0 %743
      %vm745 = vcmask 908288
      %v746 = vsel %vm745, %v740, %v742
      %v747 = vsel %vm745, %v742, %v744
      %v749 = vsel %vm244, %v727, 0
      %v752 = vsel %vm244, %v728, 0
      %v755 = vsel %vm244, %v729, 0
      %v758 = vsel %vm244, %v730, 0
      %v760 = vsel %vm232, %v746, 0
      %v762 = vsel %vm232, %v747, 0
      %764 = vmatpush.msra.mxu0 0.0
      %765 = vmatpush.msra.mxu0 0.0
      %766 = vmatpush.msra.mxu0 0.0
      %767 = vmatpush.msra.mxu0 0.0
      %768 = vmatpush.msra.mxu0 0.0
      %769 = vmatpush.msra.mxu0 0.0
      %770 = vmatpush.msra.mxu0 0.0
      %771 = vmatpush.msra.mxu0 0.0
      %772 = vmatpush.msra.mxu0 0.0
      %773 = vmatpush.msra.mxu0 0.0
      %774 = vmatpush.msra.mxu0 0.0
      %775 = vmatpush.msra.mxu0 0.0
      %776 = vmatpush.msra.mxu0 0.0
      %777 = vmatpush.msra.mxu0 0.0
      %778 = vmatpush.msra.mxu0 0.0
      %779 = vmatpush.msra.mxu0 %v760
      %780 = vmatmul.f32.gmra.mxu0 %v749
      %v781 = vpop.f32.mrf.mxu0
      %v782 = vadd.f32 0.0, %v781
      %783 = vmatmul.f32.gmra.mxu0 %v752
      %v784 = vpop.f32.mrf.mxu0
      %v785 = vadd.f32 0.0, %v784
      %786 = vmatmul.f32.gmra.mxu0 %v755
      %v787 = vpop.f32.mrf.mxu0
      %v788 = vadd.f32 0.0, %v787
      %789 = vmatmul.f32.gmra.mxu0 %v758
      %v790 = vpop.f32.mrf.mxu0
      %v791 = vadd.f32 0.0, %v790
      %792 = vdwg.mxu0
      %793 = vmatpush.msra.mxu0 0.0
      %794 = vmatpush.msra.mxu0 0.0
      %795 = vmatpush.msra.mxu0 0.0
      %796 = vmatpush.msra.mxu0 0.0
      %797 = vmatpush.msra.mxu0 0.0
      %798 = vmatpush.msra.mxu0 0.0
      %799 = vmatpush.msra.mxu0 0.0
      %800 = vmatpush.msra.mxu0 0.0
      %801 = vmatpush.msra.mxu0 0.0
      %802 = vmatpush.msra.mxu0 0.0
      %803 = vmatpush.msra.mxu0 0.0
      %804 = vmatpush.msra.mxu0 0.0
      %805 = vmatpush.msra.mxu0 0.0
      %806 = vmatpush.msra.mxu0 0.0
      %807 = vmatpush.msra.mxu0 0.0
      %808 = vmatpush.msra.mxu0 %v762
      %809 = vmatmul.f32.gmra.mxu0 %v749
      %v810 = vpop.f32.mrf.mxu0
      %v811 = vadd.f32 0.0, %v810
      %812 = vmatmul.f32.gmra.mxu0 %v752
      %v813 = vpop.f32.mrf.mxu0
      %v814 = vadd.f32 0.0, %v813
      %815 = vmatmul.f32.gmra.mxu0 %v755
      %v816 = vpop.f32.mrf.mxu0
      %v817 = vadd.f32 0.0, %v816
      %818 = vmatmul.f32.gmra.mxu0 %v758
      %v819 = vpop.f32.mrf.mxu0
      %v820 = vadd.f32 0.0, %v819
      %821 = vdwg.mxu0
      %v822 = vld [vmem:[#allocation2] sm:$0xff]
      %v823 = vld [vmem:[#allocation2 + $0x8] sm:$0xff]
      %v824 = vld [vmem:[#allocation2 + $0x10] sm:$0xff]
      %v825 = vld [vmem:[#allocation2 + $0x18] sm:$0xff]
      %v826 = vld [vmem:[#allocation2 + $0x20] sm:$0xff]
      %v827 = vld [vmem:[#allocation2 + $0x28] sm:$0xff]
      %v828 = vld [vmem:[#allocation2 + $0x30] sm:$0xff]
      %v829 = vld [vmem:[#allocation2 + $0x38] sm:$0xff]
      %v830 = vadd.f32 %v822, %v782
      %v831 = vadd.f32 %v823, %v811
      %v832 = vadd.f32 %v824, %v785
      %v833 = vadd.f32 %v825, %v814
      %v834 = vadd.f32 %v826, %v788
      %v835 = vadd.f32 %v827, %v817
      %v836 = vadd.f32 %v828, %v791
      %v837 = vadd.f32 %v829, %v820
      %838 = vst [vmem:[#allocation2] sm:$0xff] %v830
      %839 = vst [vmem:[#allocation2 + $0x8] sm:$0xff] %v831
      %840 = vst [vmem:[#allocation2 + $0x10] sm:$0xff] %v832
      %841 = vst [vmem:[#allocation2 + $0x18] sm:$0xff] %v833
      %842 = vst [vmem:[#allocation2 + $0x20] sm:$0xff] %v834
      %843 = vst [vmem:[#allocation2 + $0x28] sm:$0xff] %v835
      %844 = vst [vmem:[#allocation2 + $0x30] sm:$0xff] %v836
      %845 = vst [vmem:[#allocation2 + $0x38] sm:$0xff] %v837
      %v846 = vld [vmem:[%s220] sm:$0xff]
      %v847 = vld [vmem:[%s220 + $0x8] sm:$0xf]
      %v848 = vld [vmem:[%s451] ss:$2 sm:$0x3]
      %v850 = vperm.slane %v848, 0
      %v851 = vperm.slane %v848, 1
      %v852 = vrot.slane %v851, 4
      %v853 = vsel %vm232, %v850, %v852
      %854 = vrot.lane.b32.xlu0 %v853, 18
      %v855 = vpop.permute.xlu0 %854
      %v856 = vrot.slane %v855, 4
      %vm857 = vcmask 146432
      %v858 = vsel %vm857, %v856, %v855
      %v861 = vmul.f32 %v846, %v858
      %v862 = vmul.f32 %v847, %v856
      %s863 = scalar_lea.vmem %s2, 160
      %v864 = vld [vmem:[%s863] sm:$0xff]
      %v865 = vld [vmem:[%s863 + $0x8] sm:$0xff]
      %v866 = vld [vmem:[%s863 + $0x10] sm:$0xff]
      %v867 = vld [vmem:[%s863 + $0x18] sm:$0xff]
      %870 = vst [vmem:[#allocation1] ss:$2 sm:$0xff] %v861
      %s871 = scalar_lea.vmem [#allocation1], 16
      %872 = vst [vmem:[%s871] ss:$2 sm:$0xff] %v862
      %v873 = vld.sshfl [vmem:[#allocation1] sm:$0xff pattern:$0x75316420]
      %v874 = vld.sshfl [vmem:[#allocation1 + $0x8] sm:$0xff pattern:$0x75316420]
      %v875 = vld.sshfl [vmem:[#allocation1 + $0x10] sm:$0xff pattern:$0x75316420]
      %876 = vrot.lane.b32.xlu0 %v873, 110
      %v877 = vpop.permute.xlu0 %876
      %878 = vrot.lane.b32.xlu0 %v874, 110
      %v879 = vpop.permute.xlu0 %878
      %880 = vrot.lane.b32.xlu0 %v875, 110
      %v881 = vpop.permute.xlu0 %880
      %vm882 = vcmask 900096
      %v883 = vsel %vm882, %v877, %v879
      %v884 = vsel %vm882, %v879, %v881
      %v886 = vsel %vm244, %v864, 0
      %v889 = vsel %vm244, %v865, 0
      %v892 = vsel %vm244, %v866, 0
      %v895 = vsel %vm244, %v867, 0
      %v897 = vsel %vm232, %v883, 0
      %v899 = vsel %vm232, %v884, 0
      %901 = vmatpush.msra.mxu0 0.0
      %902 = vmatpush.msra.mxu0 0.0
      %903 = vmatpush.msra.mxu0 0.0
      %904 = vmatpush.msra.mxu0 0.0
      %905 = vmatpush.msra.mxu0 0.0
      %906 = vmatpush.msra.mxu0 0.0
      %907 = vmatpush.msra.mxu0 0.0
      %908 = vmatpush.msra.mxu0 0.0
      %909 = vmatpush.msra.mxu0 0.0
      %910 = vmatpush.msra.mxu0 0.0
      %911 = vmatpush.msra.mxu0 0.0
      %912 = vmatpush.msra.mxu0 0.0
      %913 = vmatpush.msra.mxu0 0.0
      %914 = vmatpush.msra.mxu0 0.0
      %915 = vmatpush.msra.mxu0 0.0
      %916 = vmatpush.msra.mxu0 %v897
      %917 = vmatmul.f32.gmra.mxu0 %v886
      %v918 = vpop.f32.mrf.mxu0
      %v919 = vadd.f32 0.0, %v918
      %920 = vmatmul.f32.gmra.mxu0 %v889
      %v921 = vpop.f32.mrf.mxu0
      %v922 = vadd.f32 0.0, %v921
      %923 = vmatmul.f32.gmra.mxu0 %v892
      %v924 = vpop.f32.mrf.mxu0
      %v925 = vadd.f32 0.0, %v924
      %926 = vmatmul.f32.gmra.mxu0 %v895
      %v927 = vpop.f32.mrf.mxu0
      %v928 = vadd.f32 0.0, %v927
      %929 = vdwg.mxu0
      %930 = vmatpush.msra.mxu0 0.0
      %931 = vmatpush.msra.mxu0 0.0
      %932 = vmatpush.msra.mxu0 0.0
      %933 = vmatpush.msra.mxu0 0.0
      %934 = vmatpush.msra.mxu0 0.0
      %935 = vmatpush.msra.mxu0 0.0
      %936 = vmatpush.msra.mxu0 0.0
      %937 = vmatpush.msra.mxu0 0.0
      %938 = vmatpush.msra.mxu0 0.0
      %939 = vmatpush.msra.mxu0 0.0
      %940 = vmatpush.msra.mxu0 0.0
      %941 = vmatpush.msra.mxu0 0.0
      %942 = vmatpush.msra.mxu0 0.0
      %943 = vmatpush.msra.mxu0 0.0
      %944 = vmatpush.msra.mxu0 0.0
      %945 = vmatpush.msra.mxu0 %v899
      %946 = vmatmul.f32.gmra.mxu0 %v886
      %v947 = vpop.f32.mrf.mxu0
      %v948 = vadd.f32 0.0, %v947
      %949 = vmatmul.f32.gmra.mxu0 %v889
      %v950 = vpop.f32.mrf.mxu0
      %v951 = vadd.f32 0.0, %v950
      %952 = vmatmul.f32.gmra.mxu0 %v892
      %v953 = vpop.f32.mrf.mxu0
      %v954 = vadd.f32 0.0, %v953
      %955 = vmatmul.f32.gmra.mxu0 %v895
      %v956 = vpop.f32.mrf.mxu0
      %v957 = vadd.f32 0.0, %v956
      %958 = vdwg.mxu0
      %v959 = vld [vmem:[#allocation2] sm:$0xff]
      %v960 = vld [vmem:[#allocation2 + $0x8] sm:$0xff]
      %v961 = vld [vmem:[#allocation2 + $0x10] sm:$0xff]
      %v962 = vld [vmem:[#allocation2 + $0x18] sm:$0xff]
      %v963 = vld [vmem:[#allocation2 + $0x20] sm:$0xff]
      %v964 = vld [vmem:[#allocation2 + $0x28] sm:$0xff]
      %v965 = vld [vmem:[#allocation2 + $0x30] sm:$0xff]
      %v966 = vld [vmem:[#allocation2 + $0x38] sm:$0xff]
      %v967 = vadd.f32 %v959, %v919
      %v968 = vadd.f32 %v960, %v948
      %v969 = vadd.f32 %v961, %v922
      %v970 = vadd.f32 %v962, %v951
      %v971 = vadd.f32 %v963, %v925
      %v972 = vadd.f32 %v964, %v954
      %v973 = vadd.f32 %v965, %v928
      %v974 = vadd.f32 %v966, %v957
      %975 = vst [vmem:[#allocation2] sm:$0xff] %v967
      %976 = vst [vmem:[#allocation2 + $0x8] sm:$0xff] %v968
      %977 = vst [vmem:[#allocation2 + $0x10] sm:$0xff] %v969
      %978 = vst [vmem:[#allocation2 + $0x18] sm:$0xff] %v970
      %979 = vst [vmem:[#allocation2 + $0x20] sm:$0xff] %v971
      %980 = vst [vmem:[#allocation2 + $0x28] sm:$0xff] %v972
      %981 = vst [vmem:[#allocation2 + $0x30] sm:$0xff] %v973
      %982 = vst [vmem:[#allocation2 + $0x38] sm:$0xff] %v974
      %v983 = vld [vmem:[%s220] sm:$0xff]
      %v984 = vld [vmem:[%s220 + $0x8] sm:$0xf]
      %v985 = vld [vmem:[%s4] ss:$2 sm:$0x3]
      %v987 = vperm.slane %v985, 0
      %v988 = vperm.slane %v985, 1
      %v989 = vrot.slane %v988, 4
      %v990 = vsel %vm232, %v987, %v989
      %991 = vrot.lane.b32.xlu0 %v990, 32
      %v992 = vpop.permute.xlu0 %991
      %v993 = vrot.slane %v992, 4
      %vm994 = vcmask 261120
      %v995 = vsel %vm994, %v993, %v992
      %v998 = vmul.f32 %v983, %v995
      %v999 = vmul.f32 %v984, %v993
      %s1000 = scalar_lea.vmem %s2, 192
      %v1001 = vld [vmem:[%s1000] sm:$0xff]
      %v1002 = vld [vmem:[%s1000 + $0x8] sm:$0xff]
      %v1003 = vld [vmem:[%s1000 + $0x10] sm:$0xff]
      %v1004 = vld [vmem:[%s1000 + $0x18] sm:$0xff]
      %1007 = vst [vmem:[#allocation1] ss:$2 sm:$0xff] %v998
      %s1008 = scalar_lea.vmem [#allocation1], 16
      %1009 = vst [vmem:[%s1008] ss:$2 sm:$0xff] %v999
      %v1010 = vld.sshfl [vmem:[#allocation1] sm:$0xff pattern:$0x75316420]
      %v1011 = vld.sshfl [vmem:[#allocation1 + $0x8] sm:$0xff pattern:$0x75316420]
      %v1012 = vld.sshfl [vmem:[#allocation1 + $0x10] sm:$0xff pattern:$0x75316420]
      %1013 = vrot.lane.b32.xlu0 %v1010, 96
      %v1014 = vpop.permute.xlu0 %1013
      %1015 = vrot.lane.b32.xlu0 %v1011, 96
      %v1016 = vpop.permute.xlu0 %1015
      %1017 = vrot.lane.b32.xlu0 %v1012, 96
      %v1018 = vpop.permute.xlu0 %1017
      %vm1019 = vcmask 785408
      %v1020 = vsel %vm1019, %v1014, %v1016
      %v1021 = vsel %vm1019, %v1016, %v1018
      %v1023 = vsel %vm244, %v1001, 0
      %v1026 = vsel %vm244, %v1002, 0
      %v1029 = vsel %vm244, %v1003, 0
      %v1032 = vsel %vm244, %v1004, 0
      %v1034 = vsel %vm232, %v1020, 0
      %v1036 = vsel %vm232, %v1021, 0
      %1038 = vmatpush.msra.mxu0 0.0
      %1039 = vmatpush.msra.mxu0 0.0
      %1040 = vmatpush.msra.mxu0 0.0
      %1041 = vmatpush.msra.mxu0 0.0
      %1042 = vmatpush.msra.mxu0 0.0
      %1043 = vmatpush.msra.mxu0 0.0
      %1044 = vmatpush.msra.mxu0 0.0
      %1045 = vmatpush.msra.mxu0 0.0
      %1046 = vmatpush.msra.mxu0 0.0
      %1047 = vmatpush.msra.mxu0 0.0
      %1048 = vmatpush.msra.mxu0 0.0
      %1049 = vmatpush.msra.mxu0 0.0
      %1050 = vmatpush.msra.mxu0 0.0
      %1051 = vmatpush.msra.mxu0 0.0
      %1052 = vmatpush.msra.mxu0 0.0
      %1053 = vmatpush.msra.mxu0 %v1034
      %1054 = vmatmul.f32.gmra.mxu0 %v1023
      %v1055 = vpop.f32.mrf.mxu0
      %v1056 = vadd.f32 0.0, %v1055
      %1057 = vmatmul.f32.gmra.mxu0 %v1026
      %v1058 = vpop.f32.mrf.mxu0
      %v1059 = vadd.f32 0.0, %v1058
      %1060 = vmatmul.f32.gmra.mxu0 %v1029
      %v1061 = vpop.f32.mrf.mxu0
      %v1062 = vadd.f32 0.0, %v1061
      %1063 = vmatmul.f32.gmra.mxu0 %v1032
      %v1064 = vpop.f32.mrf.mxu0
      %v1065 = vadd.f32 0.0, %v1064
      %1066 = vdwg.mxu0
      %1067 = vmatpush.msra.mxu0 0.0
      %1068 = vmatpush.msra.mxu0 0.0
      %1069 = vmatpush.msra.mxu0 0.0
      %1070 = vmatpush.msra.mxu0 0.0
      %1071 = vmatpush.msra.mxu0 0.0
      %1072 = vmatpush.msra.mxu0 0.0
      %1073 = vmatpush.msra.mxu0 0.0
      %1074 = vmatpush.msra.mxu0 0.0
      %1075 = vmatpush.msra.mxu0 0.0
      %1076 = vmatpush.msra.mxu0 0.0
      %1077 = vmatpush.msra.mxu0 0.0
      %1078 = vmatpush.msra.mxu0 0.0
      %1079 = vmatpush.msra.mxu0 0.0
      %1080 = vmatpush.msra.mxu0 0.0
      %1081 = vmatpush.msra.mxu0 0.0
      %1082 = vmatpush.msra.mxu0 %v1036
      %1083 = vmatmul.f32.gmra.mxu0 %v1023
      %v1084 = vpop.f32.mrf.mxu0
      %v1085 = vadd.f32 0.0, %v1084
      %1086 = vmatmul.f32.gmra.mxu0 %v1026
      %v1087 = vpop.f32.mrf.mxu0
      %v1088 = vadd.f32 0.0, %v1087
      %1089 = vmatmul.f32.gmra.mxu0 %v1029
      %v1090 = vpop.f32.mrf.mxu0
      %v1091 = vadd.f32 0.0, %v1090
      %1092 = vmatmul.f32.gmra.mxu0 %v1032
      %v1093 = vpop.f32.mrf.mxu0
      %v1094 = vadd.f32 0.0, %v1093
      %1095 = vdwg.mxu0
      %v1096 = vld [vmem:[#allocation2] sm:$0xff]
      %v1097 = vld [vmem:[#allocation2 + $0x8] sm:$0xff]
      %v1098 = vld [vmem:[#allocation2 + $0x10] sm:$0xff]
      %v1099 = vld [vmem:[#allocation2 + $0x18] sm:$0xff]
      %v1100 = vld [vmem:[#allocation2 + $0x20] sm:$0xff]
      %v1101 = vld [vmem:[#allocation2 + $0x28] sm:$0xff]
      %v1102 = vld [vmem:[#allocation2 + $0x30] sm:$0xff]
      %v1103 = vld [vmem:[#allocation2 + $0x38] sm:$0xff]
      %v1104 = vadd.f32 %v1096, %v1056
      %v1105 = vadd.f32 %v1097, %v1085
      %v1106 = vadd.f32 %v1098, %v1059
      %v1107 = vadd.f32 %v1099, %v1088
      %v1108 = vadd.f32 %v1100, %v1062
      %v1109 = vadd.f32 %v1101, %v1091
      %v1110 = vadd.f32 %v1102, %v1065
      %v1111 = vadd.f32 %v1103, %v1094
      %1112 = vst [vmem:[#allocation2] sm:$0xff] %v1104
      %1113 = vst [vmem:[#allocation2 + $0x8] sm:$0xff] %v1105
      %1114 = vst [vmem:[#allocation2 + $0x10] sm:$0xff] %v1106
      %1115 = vst [vmem:[#allocation2 + $0x18] sm:$0xff] %v1107
      %1116 = vst [vmem:[#allocation2 + $0x20] sm:$0xff] %v1108
      %1117 = vst [vmem:[#allocation2 + $0x28] sm:$0xff] %v1109
      %1118 = vst [vmem:[#allocation2 + $0x30] sm:$0xff] %v1110
      %1119 = vst [vmem:[#allocation2 + $0x38] sm:$0xff] %v1111
      %v1120 = vld [vmem:[%s220] sm:$0xff]
      %v1121 = vld [vmem:[%s220 + $0x8] sm:$0xf]
      %s1122 = scalar_lea.vmem %s2, 224
      %v1123 = vld [vmem:[%s1122] sm:$0xff]
      %v1124 = vld [vmem:[%s1122 + $0x8] sm:$0xff]
      %v1125 = vld [vmem:[%s1122 + $0x10] sm:$0xff]
      %v1126 = vld [vmem:[%s1122 + $0x18] sm:$0xff]
      %1129 = vst [vmem:[#allocation1] ss:$2 sm:$0xff] %v1120
      %s1130 = scalar_lea.vmem [#allocation1], 16
      %1131 = vst [vmem:[%s1130] ss:$2 sm:$0xff] %v1121
      %v1132 = vld.sshfl [vmem:[#allocation1] sm:$0xff pattern:$0x75316420]
      %v1133 = vld.sshfl [vmem:[#allocation1 + $0x8] sm:$0xff pattern:$0x75316420]
      %v1134 = vld.sshfl [vmem:[#allocation1 + $0x10] sm:$0xff pattern:$0x75316420]
      %1135 = vrot.lane.b32.xlu0 %v1132, 95
      %v1136 = vpop.permute.xlu0 %1135
      %1137 = vrot.lane.b32.xlu0 %v1133, 95
      %v1138 = vpop.permute.xlu0 %1137
      %1139 = vrot.lane.b32.xlu0 %v1134, 95
      %v1140 = vpop.permute.xlu0 %1139
      %vm1141 = vcmask 777216
      %v1142 = vsel %vm1141, %v1136, %v1138
      %v1143 = vsel %vm1141, %v1138, %v1140
      %v1145 = vsel %vm244, %v1123, 0
      %v1148 = vsel %vm244, %v1124, 0
      %v1151 = vsel %vm244, %v1125, 0
      %v1154 = vsel %vm244, %v1126, 0
      %v1156 = vsel %vm232, %v1142, 0
      %v1158 = vsel %vm232, %v1143, 0
      %1160 = vmatpush.msra.mxu0 0.0
      %1161 = vmatpush.msra.mxu0 0.0
      %1162 = vmatpush.msra.mxu0 0.0
      %1163 = vmatpush.msra.mxu0 0.0
      %1164 = vmatpush.msra.mxu0 0.0
      %1165 = vmatpush.msra.mxu0 0.0
      %1166 = vmatpush.msra.mxu0 0.0
      %1167 = vmatpush.msra.mxu0 0.0
      %1168 = vmatpush.msra.mxu0 0.0
      %1169 = vmatpush.msra.mxu0 0.0
      %1170 = vmatpush.msra.mxu0 0.0
      %1171 = vmatpush.msra.mxu0 0.0
      %1172 = vmatpush.msra.mxu0 0.0
      %1173 = vmatpush.msra.mxu0 0.0
      %1174 = vmatpush.msra.mxu0 0.0
      %1175 = vmatpush.msra.mxu0 %v1156
      %1176 = vmatmul.f32.gmra.mxu0 %v1145
      %v1177 = vpop.f32.mrf.mxu0
      %v1178 = vadd.f32 0.0, %v1177
      %1179 = vmatmul.f32.gmra.mxu0 %v1148
      %v1180 = vpop.f32.mrf.mxu0
      %v1181 = vadd.f32 0.0, %v1180
      %1182 = vmatmul.f32.gmra.mxu0 %v1151
      %v1183 = vpop.f32.mrf.mxu0
      %v1184 = vadd.f32 0.0, %v1183
      %1185 = vmatmul.f32.gmra.mxu0 %v1154
      %v1186 = vpop.f32.mrf.mxu0
      %v1187 = vadd.f32 0.0, %v1186
      %1188 = vdwg.mxu0
      %1189 = vmatpush.msra.mxu0 0.0
      %1190 = vmatpush.msra.mxu0 0.0
      %1191 = vmatpush.msra.mxu0 0.0
      %1192 = vmatpush.msra.mxu0 0.0
      %1193 = vmatpush.msra.mxu0 0.0
      %1194 = vmatpush.msra.mxu0 0.0
      %1195 = vmatpush.msra.mxu0 0.0
      %1196 = vmatpush.msra.mxu0 0.0
      %1197 = vmatpush.msra.mxu0 0.0
      %1198 = vmatpush.msra.mxu0 0.0
      %1199 = vmatpush.msra.mxu0 0.0
      %1200 = vmatpush.msra.mxu0 0.0
      %1201 = vmatpush.msra.mxu0 0.0
      %1202 = vmatpush.msra.mxu0 0.0
      %1203 = vmatpush.msra.mxu0 0.0
      %1204 = vmatpush.msra.mxu0 %v1158
      %1205 = vmatmul.f32.gmra.mxu0 %v1145
      %v1206 = vpop.f32.mrf.mxu0
      %v1207 = vadd.f32 0.0, %v1206
      %1208 = vmatmul.f32.gmra.mxu0 %v1148
      %v1209 = vpop.f32.mrf.mxu0
      %v1210 = vadd.f32 0.0, %v1209
      %1211 = vmatmul.f32.gmra.mxu0 %v1151
      %v1212 = vpop.f32.mrf.mxu0
      %v1213 = vadd.f32 0.0, %v1212
      %1214 = vmatmul.f32.gmra.mxu0 %v1154
      %v1215 = vpop.f32.mrf.mxu0
      %v1216 = vadd.f32 0.0, %v1215
      %1217 = vdwg.mxu0
      %v1218 = vld [vmem:[#allocation2] sm:$0xff]
      %v1219 = vld [vmem:[#allocation2 + $0x8] sm:$0xff]
      %v1220 = vld [vmem:[#allocation2 + $0x10] sm:$0xff]
      %v1221 = vld [vmem:[#allocation2 + $0x18] sm:$0xff]
      %v1222 = vld [vmem:[#allocation2 + $0x20] sm:$0xff]
      %v1223 = vld [vmem:[#allocation2 + $0x28] sm:$0xff]
      %v1224 = vld [vmem:[#allocation2 + $0x30] sm:$0xff]
      %v1225 = vld [vmem:[#allocation2 + $0x38] sm:$0xff]
      %v1226 = vadd.f32 %v1218, %v1178
      %v1227 = vadd.f32 %v1219, %v1207
      %v1228 = vadd.f32 %v1220, %v1181
      %v1229 = vadd.f32 %v1221, %v1210
      %v1230 = vadd.f32 %v1222, %v1184
      %v1231 = vadd.f32 %v1223, %v1213
      %v1232 = vadd.f32 %v1224, %v1187
      %v1233 = vadd.f32 %v1225, %v1216
      %1234 = vst [vmem:[#allocation2] sm:$0xff] %v1226
      %1235 = vst [vmem:[#allocation2 + $0x8] sm:$0xff] %v1227
      %1236 = vst [vmem:[#allocation2 + $0x10] sm:$0xff] %v1228
      %1237 = vst [vmem:[#allocation2 + $0x18] sm:$0xff] %v1229
      %1238 = vst [vmem:[#allocation2 + $0x20] sm:$0xff] %v1230
      %1239 = vst [vmem:[#allocation2 + $0x28] sm:$0xff] %v1231
      %1240 = vst [vmem:[#allocation2 + $0x30] sm:$0xff] %v1232
      %1241 = vst [vmem:[#allocation2 + $0x38] sm:$0xff] %v1233
      %v1242 = vld [vmem:[%s220] sm:$0xff]
      %v1243 = vld [vmem:[%s220 + $0x8] sm:$0xf]
      %v1244 = vld [vmem:[%s451] ss:$2 sm:$0x3]
      %v1246 = vperm.slane %v1244, 0
      %v1247 = vperm.slane %v1244, 1
      %v1248 = vrot.slane %v1247, 4
      %v1249 = vsel %vm232, %v1246, %v1248
      %1250 = vrot.lane.b32.xlu0 %v1249, 34
      %v1251 = vpop.permute.xlu0 %1250
      %v1252 = vrot.slane %v1251, 4
      %vm1253 = vcmask 277504
      %v1254 = vsel %vm1253, %v1252, %v1251
      %v1257 = vmul.f32 %v1242, %v1254
      %v1258 = vmul.f32 %v1243, %v1252
      %s1259 = scalar_lea.vmem %s2, 256
      %v1260 = vld [vmem:[%s1259] sm:$0xff]
      %v1261 = vld [vmem:[%s1259 + $0x8] sm:$0xff]
      %v1262 = vld [vmem:[%s1259 + $0x10] sm:$0xff]
      %v1263 = vld [vmem:[%s1259 + $0x18] sm:$0xff]
      %1266 = vst [vmem:[#allocation1] ss:$2 sm:$0xff] %v1257
      %s1267 = scalar_lea.vmem [#allocation1], 16
      %1268 = vst [vmem:[%s1267] ss:$2 sm:$0xff] %v1258
      %v1269 = vld.sshfl [vmem:[#allocation1] sm:$0xff pattern:$0x75316420]
      %v1270 = vld.sshfl [vmem:[#allocation1 + $0x8] sm:$0xff pattern:$0x75316420]
      %v1271 = vld.sshfl [vmem:[#allocation1 + $0x10] sm:$0xff pattern:$0x75316420]
      %1272 = vrot.lane.b32.xlu0 %v1269, 94
      %v1273 = vpop.permute.xlu0 %1272
      %1274 = vrot.lane.b32.xlu0 %v1270, 94
      %v1275 = vpop.permute.xlu0 %1274
      %1276 = vrot.lane.b32.xlu0 %v1271, 94
      %v1277 = vpop.permute.xlu0 %1276
      %vm1278 = vcmask 769024
      %v1279 = vsel %vm1278, %v1273, %v1275
      %v1280 = vsel %vm1278, %v1275, %v1277
      %v1282 = vsel %vm244, %v1260, 0
      %v1285 = vsel %vm244, %v1261, 0
      %v1288 = vsel %vm244, %v1262, 0
      %v1291 = vsel %vm244, %v1263, 0
      %v1293 = vsel %vm232, %v1279, 0
      %v1295 = vsel %vm232, %v1280, 0
      %1297 = vmatpush.msra.mxu0 0.0
      %1298 = vmatpush.msra.mxu0 0.0
      %1299 = vmatpush.msra.mxu0 0.0
      %1300 = vmatpush.msra.mxu0 0.0
      %1301 = vmatpush.msra.mxu0 0.0
      %1302 = vmatpush.msra.mxu0 0.0
      %1303 = vmatpush.msra.mxu0 0.0
      %1304 = vmatpush.msra.mxu0 0.0
      %1305 = vmatpush.msra.mxu0 0.0
      %1306 = vmatpush.msra.mxu0 0.0
      %1307 = vmatpush.msra.mxu0 0.0
      %1308 = vmatpush.msra.mxu0 0.0
      %1309 = vmatpush.msra.mxu0 0.0
      %1310 = vmatpush.msra.mxu0 0.0
      %1311 = vmatpush.msra.mxu0 0.0
      %1312 = vmatpush.msra.mxu0 %v1293
      %1313 = vmatmul.f32.gmra.mxu0 %v1282
      %v1314 = vpop.f32.mrf.mxu0
      %v1315 = vadd.f32 0.0, %v1314
      %1316 = vmatmul.f32.gmra.mxu0 %v1285
      %v1317 = vpop.f32.mrf.mxu0
      %v1318 = vadd.f32 0.0, %v1317
      %1319 = vmatmul.f32.gmra.mxu0 %v1288
      %v1320 = vpop.f32.mrf.mxu0
      %v1321 = vadd.f32 0.0, %v1320
      %1322 = vmatmul.f32.gmra.mxu0 %v1291
      %v1323 = vpop.f32.mrf.mxu0
      %v1324 = vadd.f32 0.0, %v1323
      %1325 = vdwg.mxu0
      %1326 = vmatpush.msra.mxu0 0.0
      %1327 = vmatpush.msra.mxu0 0.0
      %1328 = vmatpush.msra.mxu0 0.0
      %1329 = vmatpush.msra.mxu0 0.0
      %1330 = vmatpush.msra.mxu0 0.0
      %1331 = vmatpush.msra.mxu0 0.0
      %1332 = vmatpush.msra.mxu0 0.0
      %1333 = vmatpush.msra.mxu0 0.0
      %1334 = vmatpush.msra.mxu0 0.0
      %1335 = vmatpush.msra.mxu0 0.0
      %1336 = vmatpush.msra.mxu0 0.0
      %1337 = vmatpush.msra.mxu0 0.0
      %1338 = vmatpush.msra.mxu0 0.0
      %1339 = vmatpush.msra.mxu0 0.0
      %1340 = vmatpush.msra.mxu0 0.0
      %1341 = vmatpush.msra.mxu0 %v1295
      %1342 = vmatmul.f32.gmra.mxu0 %v1282
      %v1343 = vpop.f32.mrf.mxu0
      %v1344 = vadd.f32 0.0, %v1343
      %1345 = vmatmul.f32.gmra.mxu0 %v1285
      %v1346 = vpop.f32.mrf.mxu0
      %v1347 = vadd.f32 0.0, %v1346
      %1348 = vmatmul.f32.gmra.mxu0 %v1288
      %v1349 = vpop.f32.mrf.mxu0
      %v1350 = vadd.f32 0.0, %v1349
      %1351 = vmatmul.f32.gmra.mxu0 %v1291
      %v1352 = vpop.f32.mrf.mxu0
      %v1353 = vadd.f32 0.0, %v1352
      %1354 = vdwg.mxu0
      %v1355 = vld [vmem:[#allocation2] sm:$0xff]
      %v1356 = vld [vmem:[#allocation2 + $0x8] sm:$0xff]
      %v1357 = vld [vmem:[#allocation2 + $0x10] sm:$0xff]
      %v1358 = vld [vmem:[#allocation2 + $0x18] sm:$0xff]
      %v1359 = vld [vmem:[#allocation2 + $0x20] sm:$0xff]
      %v1360 = vld [vmem:[#allocation2 + $0x28] sm:$0xff]
      %v1361 = vld [vmem:[#allocation2 + $0x30] sm:$0xff]
      %v1362 = vld [vmem:[#allocation2 + $0x38] sm:$0xff]
      %v1363 = vadd.f32 %v1355, %v1315
      %v1364 = vadd.f32 %v1356, %v1344
      %v1365 = vadd.f32 %v1357, %v1318
      %v1366 = vadd.f32 %v1358, %v1347
      %v1367 = vadd.f32 %v1359, %v1321
      %v1368 = vadd.f32 %v1360, %v1350
      %v1369 = vadd.f32 %v1361, %v1324
      %v1370 = vadd.f32 %v1362, %v1353
      %1371 = vst [vmem:[#allocation2] sm:$0xff] %v1363
      %1372 = vst [vmem:[#allocation2 + $0x8] sm:$0xff] %v1364
      %1373 = vst [vmem:[#allocation2 + $0x10] sm:$0xff] %v1365
      %1374 = vst [vmem:[#allocation2 + $0x18] sm:$0xff] %v1366
      %1375 = vst [vmem:[#allocation2 + $0x20] sm:$0xff] %v1367
      %1376 = vst [vmem:[#allocation2 + $0x28] sm:$0xff] %v1368
      %1377 = vst [vmem:[#allocation2 + $0x30] sm:$0xff] %v1369
      %1378 = vst [vmem:[#allocation2 + $0x38] sm:$0xff] %v1370
      %v1379 = vld [vmem:[#allocation2] sm:$0xff]
      %v1380 = vld [vmem:[#allocation2 + $0x8] sm:$0xff]
      %v1381 = vld [vmem:[#allocation2 + $0x10] sm:$0xff]
      %v1382 = vld [vmem:[#allocation2 + $0x18] sm:$0xff]
      %v1383 = vld [vmem:[#allocation2 + $0x20] sm:$0xff]
      %v1384 = vld [vmem:[#allocation2 + $0x28] sm:$0xff]
      %v1385 = vld [vmem:[#allocation2 + $0x30] sm:$0xff]
      %v1386 = vld [vmem:[#allocation2 + $0x38] sm:$0xff]
      %v1387 = vld [vmem:[%s3] sm:$0xff]
      %v1388 = vld [vmem:[%s3 + $0x8] sm:$0xff]
      %v1389 = vld [vmem:[%s3 + $0x10] sm:$0xff]
      %v1390 = vld [vmem:[%s3 + $0x18] sm:$0xff]
      %1392 = vset.pattern.permute.xlu0 0
      %1393 = vperm.xlu0 %1392, %v1387
      %v1394 = vpop.permute.xlu0 %1393
      %1397 = vset.pattern.permute.xlu0 0
      %1398 = vperm.xlu0 %1397, %v1388
      %v1399 = vpop.permute.xlu0 %1398
      %1402 = vset.pattern.permute.xlu0 0
      %1403 = vperm.xlu0 %1402, %v1389
      %v1404 = vpop.permute.xlu0 %1403
      %1407 = vset.pattern.permute.xlu0 0
      %1408 = vperm.xlu0 %1407, %v1390
      %v1409 = vpop.permute.xlu0 %1408
      %v1411 = vadd.f32 %v1379, %v1394
      %v1412 = vadd.f32 %v1380, %v1394
      %v1413 = vadd.f32 %v1381, %v1399
      %v1414 = vadd.f32 %v1382, %v1399
      %v1415 = vadd.f32 %v1383, %v1404
      %v1416 = vadd.f32 %v1384, %v1404
      %v1417 = vadd.f32 %v1385, %v1409
      %v1418 = vadd.f32 %v1386, %v1409
      %vm1419 = vcmp.gt.f32.partialorder %v1411, 0.0
      %vm1420 = vcmp.gt.f32.partialorder %v1412, 0.0
      %vm1421 = vcmp.gt.f32.partialorder %v1413, 0.0
      %vm1422 = vcmp.gt.f32.partialorder %v1414, 0.0
      %vm1423 = vcmp.gt.f32.partialorder %v1415, 0.0
      %vm1424 = vcmp.gt.f32.partialorder %v1416, 0.0
      %vm1425 = vcmp.gt.f32.partialorder %v1417, 0.0
      %vm1426 = vcmp.gt.f32.partialorder %v1418, 0.0
      %v1427 = vmul.f32 %v1411, 0.01
      %v1428 = vmul.f32 %v1412, 0.01
      %v1429 = vmul.f32 %v1413, 0.01
      %v1430 = vmul.f32 %v1414, 0.01
      %v1431 = vmul.f32 %v1415, 0.01
      %v1432 = vmul.f32 %v1416, 0.01
      %v1433 = vmul.f32 %v1417, 0.01
      %v1434 = vmul.f32 %v1418, 0.01
      %v1435 = vsel %vm1419, %v1411, %v1427
      %v1436 = vsel %vm1420, %v1412, %v1428
      %v1437 = vsel %vm1421, %v1413, %v1429
      %v1438 = vsel %vm1422, %v1414, %v1430
      %v1439 = vsel %vm1423, %v1415, %v1431
      %v1440 = vsel %vm1424, %v1416, %v1432
      %v1441 = vsel %vm1425, %v1417, %v1433
      %v1442 = vsel %vm1426, %v1418, %v1434
      %s1443 = sld [smem:[#allocation3]]
      %v1444 = vmax.f32 %v1435, 1e-06
      %v1445 = vmax.f32 %v1436, 1e-06
      %v1446 = vmax.f32 %v1437, 1e-06
      %v1447 = vmax.f32 %v1438, 1e-06
      %v1448 = vmax.f32 %v1439, 1e-06
      %v1449 = vmax.f32 %v1440, 1e-06
      %v1450 = vmax.f32 %v1441, 1e-06
      %v1451 = vmax.f32 %v1442, 1e-06
      %v1452 = vlog2.pop %v1444
      %v1453 = vmul.f32 %v1452, 0.6931472
      %v1454 = vlog2.pop %v1445
      %v1455 = vmul.f32 %v1454, 0.6931472
      %v1456 = vlog2.pop %v1446
      %v1457 = vmul.f32 %v1456, 0.6931472
      %v1458 = vlog2.pop %v1447
      %v1459 = vmul.f32 %v1458, 0.6931472
      %v1460 = vlog2.pop %v1448
      %v1461 = vmul.f32 %v1460, 0.6931472
      %v1462 = vlog2.pop %v1449
      %v1463 = vmul.f32 %v1462, 0.6931472
      %v1464 = vlog2.pop %v1450
      %v1465 = vmul.f32 %v1464, 0.6931472
      %v1466 = vlog2.pop %v1451
      %v1467 = vmul.f32 %v1466, 0.6931472
      %v1468 = vstv %s1443
      %v1469 = vmul.f32 %v1468, %v1453
      %v1470 = vmul.f32 %v1468, %v1455
      %v1471 = vmul.f32 %v1468, %v1457
      %v1472 = vmul.f32 %v1468, %v1459
      %v1473 = vmul.f32 %v1468, %v1461
      %v1474 = vmul.f32 %v1468, %v1463
      %v1475 = vmul.f32 %v1468, %v1465
      %v1476 = vmul.f32 %v1468, %v1467
      %v1477 = vmul.f32 %v1469, 1.442695
      %v1478 = vpow.pop %v1477
      %v1479 = vmul.f32 %v1470, 1.442695
      %v1480 = vpow.pop %v1479
      %v1481 = vmul.f32 %v1471, 1.442695
      %v1482 = vpow.pop %v1481
      %v1483 = vmul.f32 %v1472, 1.442695
      %v1484 = vpow.pop %v1483
      %v1485 = vmul.f32 %v1473, 1.442695
      %v1486 = vpow.pop %v1485
      %v1487 = vmul.f32 %v1474, 1.442695
      %v1488 = vpow.pop %v1487
      %v1489 = vmul.f32 %v1475, 1.442695
      %v1490 = vpow.pop %v1489
      %v1491 = vmul.f32 %v1476, 1.442695
      %v1492 = vpow.pop %v1491
      %v1493 = vadd.f32 %v1478, %v1480
      %1494 = vadd.xlane.f32.xlu0 %v1493
      %v1495 = vpop.xlane.xlu0 %1494
      %v1496 = vadd.f32 %v1482, %v1484
      %1497 = vadd.xlane.f32.xlu0 %v1496
      %v1498 = vpop.xlane.xlu0 %1497
      %v1499 = vadd.f32 %v1486, %v1488
      %1500 = vadd.xlane.f32.xlu0 %v1499
      %v1501 = vpop.xlane.xlu0 %1500
      %v1502 = vadd.f32 %v1490, %v1492
      %1503 = vadd.xlane.f32.xlu0 %v1502
      %v1504 = vpop.xlane.xlu0 %1503
      %v1505 = vmul.f32 %v1495, 0.00390625
      %v1506 = vmul.f32 %v1498, 0.00390625
      %v1507 = vmul.f32 %v1501, 0.00390625
      %v1508 = vmul.f32 %v1504, 0.00390625
      %v1509 = vlog2.pop %v1505
      %v1510 = vmul.f32 %v1509, 0.6931472
      %v1511 = vlog2.pop %v1506
      %v1512 = vmul.f32 %v1511, 0.6931472
      %v1513 = vlog2.pop %v1507
      %v1514 = vmul.f32 %v1513, 0.6931472
      %v1515 = vlog2.pop %v1508
      %v1516 = vmul.f32 %v1515, 0.6931472
      %v1517 = vrcp.pop %v1468
      %v1518 = vmul.f32 %v1468, %v1517
      %v1519 = vsub.f32 1.0, %v1518
      %v1520 = vmul.f32 %v1517, %v1519
      %v1521 = vadd.f32 %v1517, %v1520
      %vm1522 = vweird.f32 %v1468
      %vm1523 = vweird.f32 %v1517
      %vm1524 = vmor %vm1522, %vm1523
      %v1525 = vsel %vm1524, %v1517, %v1521
      %v1526 = vand.u32 2147483647, %v1468
      %vm1527 = vcmp.eq.f32.partialorder %v1526, 8.507059e+37
      %v1528 = vand.u32 %v1468, 2147483648
      %v1529 = vor.u32 1.1754944e-38, %v1528
      %v1530 = vsel %vm1527, %v1529, %v1525
      %v1531 = vmul.f32 %v1510, %v1530
      %v1532 = vmul.f32 %v1512, %v1530
      %v1533 = vmul.f32 %v1514, %v1530
      %v1534 = vmul.f32 %v1516, %v1530
      %v1535 = vmul.f32 %v1531, 1.442695
      %v1536 = vpow.pop %v1535
      %v1537 = vmul.f32 %v1532, 1.442695
      %v1538 = vpow.pop %v1537
      %v1539 = vmul.f32 %v1533, 1.442695
      %v1540 = vpow.pop %v1539
      %v1541 = vmul.f32 %v1534, 1.442695
      %v1542 = vpow.pop %v1541
      %v1543 = vmul.f32 %v1536, %v1536
      %v1544 = vmul.f32 %v1538, %v1538
      %v1545 = vmul.f32 %v1540, %v1540
      %v1546 = vmul.f32 %v1542, %v1542
      %v1547 = vadd.f32 %v1543, %v1544
      %v1548 = vadd.f32 %v1547, %v1545
      %v1549 = vadd.f32 %v1548, %v1546
      %v1550 = vrot.slane %v1549, 4
      %v1551 = vadd.f32 %v1549, %v1550
      %v1552 = vrot.slane %v1551, 2
      %v1553 = vadd.f32 %v1551, %v1552
      %v1554 = vrot.slane %v1553, 1
      %v1555 = vadd.f32 %v1553, %v1554
      %v1556 = vrsqrt.pop %v1555
      %v1557 = vmul.f32 %v1556, %v1555
      %v1558 = vmul.f32 %v1557, %v1556
      %v1559 = vmul.f32 0.5, %v1558
      %v1560 = vsub.f32 1.5, %v1559
      %v1561 = vmul.f32 %v1556, %v1560
      %v1562 = vmul.f32 %v1555, %v1561
      %vm1563 = vcmp.eq.f32.partialorder %v1555, inf
      %v1564 = vsel %vm1563, %v1555, %v1562
      %vm1565 = vcmp.eq.f32.partialorder %v1555, 0.0
      %v1566 = vand.u32 %v1555, 2147483648
      %v1567 = vsel %vm1565, %v1566, %v1564
      %v1568 = vadd.f32 %v1567, 1e-06
      %v1569 = vrcp.pop %v1568
      %v1570 = vmul.f32 %v1568, %v1569
      %v1571 = vsub.f32 1.0, %v1570
      %v1572 = vmul.f32 %v1569, %v1571
      %v1573 = vadd.f32 %v1569, %v1572
      %vm1574 = vweird.f32 %v1568
      %vm1575 = vweird.f32 %v1569
      %vm1576 = vmor %vm1574, %vm1575
      %v1577 = vsel %vm1576, %v1569, %v1573
      %v1578 = vand.u32 2147483647, %v1568
      %vm1579 = vcmp.eq.f32.partialorder %v1578, 8.507059e+37
      %v1580 = vand.u32 %v1568, 2147483648
      %v1581 = vor.u32 1.1754944e-38, %v1580
      %v1582 = vsel %vm1579, %v1581, %v1577
      %v1583 = vmul.f32 %v1536, %v1582
      %v1584 = vmul.f32 %v1538, %v1582
      %v1585 = vmul.f32 %v1540, %v1582
      %v1586 = vmul.f32 %v1542, %v1582
      %vm1587 = vcmask 7168
      %1588 = vst.msk [vmem:[%s225] sm:$0xff] %vm1587, %v1583
      %1589 = vst.msk [vmem:[%s225 + $0x8] sm:$0xff] %vm1587, %v1584
      %1590 = vst.msk [vmem:[%s225 + $0x10] sm:$0xff] %vm1587, %v1585
      %1591 = vst.msk [vmem:[%s225 + $0x18] sm:$0xff] %vm1587, %v1586
      %p1592 = scmp.lt.s32.totalorder %s17, 1
      %s1593 = scalar_select %p1592, %s17, 1
      %s1594 = smul.addr %s1593, 4
      %s1595 = smul.addr %s1594, 8
      %s1596 = scalar_lea.vmem %s5, %s1595
      // Predicated region
      $region41: #{base_cnn_forward.2} parent=39 // pred_check
        %p1597 = pneg %p145
      $region42: #{base_cnn_forward.2} parent=39 // pred_check_branch
        %1599 = sbr.rel (%p1597) target = $region44
      $region43: #{base_cnn_forward.2} parent=39 // pred_region
        _
      $region44: #{base_cnn_forward.2} parent=39 // pred_fallthru
        _
    $region40: #{base_cnn_forward.2} parent=5 // pred_fallthru
      _
    %p1600 = scmp.le.s32.totalorder 2, %s12
    // Predicated region
    $region45: #{base_cnn_forward.2} parent=5 // pred_check
      %p1601 = pneg %p1600
    $region46: #{base_cnn_forward.2} parent=5 // pred_check_branch
      %1603 = sbr.rel (%p1601) target = $region48
    $region47: #{base_cnn_forward.2} parent=5 // pred_region
      %s1604 = ssub.s32 %s12, 2
      // Predicated region
      $region49: #{base_cnn_forward.2} parent=47 // pred_check
        %p1605 = pneg %p151
      $region50: #{base_cnn_forward.2} parent=47 // pred_check_branch
        %1607 = sbr.rel (%p1605) target = $region52
      $region51: #{base_cnn_forward.2} parent=47 // pred_region
        %p1608 = scmp.lt.s32.totalorder %s18, 1
        %s1609 = scalar_select %p1608, %s18, 1
        %s1610 = smul.addr %s1609, 4
        %s1611 = smul.addr %s1610, 8
        %s1612 = scalar_lea.vmem %s5, %s1611
      $region52: #{base_cnn_forward.2} parent=47 // pred_fallthru
        _
    $region48: #{base_cnn_forward.2} parent=5 // pred_fallthru
      _
  $region6: #{base_cnn_forward.2} parent=0 // loop_footer
    %s16 = sadd.s32 1, %s12
  $region7: #{base_cnn_forward.2} parent=0 // loop_footer_branch
    %11 = sbr.rel target = $region3
  $region8: #{base_cnn_forward.2} parent=0 // loop_exit
    _

</llo_original>
